<compile_context>
chip_gen: v7x
topology: tpu7x:2x2x1
jax: 0.10.0
libtpu: 0.0.40
codegen_flags: <defaults>
</compile_context>

<pallas_src>
import numpy as np

import jax
import jax.numpy as jnp
from jax.experimental import pallas as pl
from jax.experimental.pallas import tpu as pltpu


# ----------------------------------------------------------------------------
# Host-side spatial operators (pure numpy, f32)
# ----------------------------------------------------------------------------
def shift_mat(L, d):
    """(A @ S)[:, j] = A[:, j + d] if 0 <= j + d < L else 0   (zero-padded shift)."""
    return np.eye(L, k=-d, dtype=np.float32)


def adaptive_pool_matrix(Lin, Lout):
    """PyTorch AdaptiveAvgPool1d matrix P (Lout, Lin): pooled = a @ P.T."""
    P = np.zeros((Lout, Lin), np.float32)
    for o in range(Lout):
        start = (o * Lin) // Lout
        end = -(-((o + 1) * Lin) // Lout)  # ceil
        P[o, start:end] = 1.0 / (end - start)
    return P


def interp_matrix(Lin, Lout):
    """Bilinear interpolation (align_corners=False) matrix U (Lout, Lin): z = y @ U.T."""
    U = np.zeros((Lout, Lin), np.float32)
    scale = Lin / Lout
    for o in range(Lout):
        src = max((o + 0.5) * scale - 0.5, 0.0)
        i0 = min(int(np.floor(src)), Lin - 1)
        i1 = min(i0 + 1, Lin - 1)
        lam = src - i0
        U[o, i0] += 1.0 - lam
        U[o, i1] += lam
    return U


def _taps_h(w):   # conv weight (C, C, 3, 1) -> 3 x (C, C)
    return [np.asarray(w[:, :, k, 0], np.float32) for k in range(3)]


def _taps_w(w):   # conv weight (C, C, 1, 3) -> 3 x (C, C)
    return [np.asarray(w[:, :, 0, k], np.float32) for k in range(3)]


# ----------------------------------------------------------------------------
# Host-side folding of the whole CNBlock into two packed matmul operands
# ----------------------------------------------------------------------------
def fold_cnblock_params(P, C, H, W):
    HW = H * W
    Pn = {k: np.asarray(v, np.float32) for k, v in P.items()}

    # direction pool / broadcast matrices on the flat spatial axis
    M1 = np.zeros((HW, H), np.float32)   # mean over W
    M2 = np.zeros((HW, W), np.float32)   # mean over H
    E1 = np.zeros((H, HW), np.float32)   # broadcast row gate to flat layout
    E2 = np.zeros((W, HW), np.float32)   # broadcast col gate to flat layout
    for h in range(H):
        for w in range(W):
            s = h * W + w
            M1[s, h] = 1.0 / W
            M2[s, w] = 1.0 / H
            E1[h, s] = 1.0
            E2[w, s] = 1.0

    lin_h, lin_w, sig_h, sig_w = [], [], [], []     # (channel-mix, spatial-mix) pairs
    brow_lin = np.zeros((C, H), np.float32)
    bcol_lin = np.zeros((C, W), np.float32)

    # ---- H1 (sigmoid branch): bn1/bn2 and conv3 folded into the channel matrices ----
    W3 = Pn["w1c3"][:, :, 0, 0]
    for k, wk in enumerate(_taps_h(Pn["w1c1"])):
        sig_h.append((W3 @ (Pn["s11"][:, None] * wk), shift_mat(H, k - 1)))
    for k, wk in enumerate(_taps_w(Pn["w1c2"])):
        sig_w.append((W3 @ (Pn["s12"][:, None] * wk), shift_mat(W, k - 1)))
    csig = W3 @ Pn["t11"] + W3 @ Pn["t12"] + Pn["b1c3"]
    brow_sig = np.tile(csig[:, None], (1, H)).astype(np.float32)
    bcol_sig = np.zeros((C, W), np.float32)

    # ---- H2: conv -> bn -> dilated conv -> bn, all folded (per direction) ----
    def fold_h2(L, a_taps, sA, tA, d_taps, bD, sD, tD, pairs, brow):
        A = [sA[:, None] * w for w in a_taps]
        D = [sD[:, None] * w for w in d_taps]
        for m in range(3):
            Sm = shift_mat(L, 2 * m - 2)                  # dilation-2 taps
            for k in range(3):
                pairs.append((D[m] @ A[k], shift_mat(L, k - 1) @ Sm))
            brow = brow + (D[m] @ tA)[:, None] * (np.ones((1, L), np.float32) @ Sm)
        return brow + (sD * bD + tD)[:, None]

    brow_lin = fold_h2(H, _taps_h(Pn["w2c1"]), Pn["s21"], Pn["t21"],
                       _taps_h(Pn["w2c12"]), Pn["b2c12"], Pn["s23"], Pn["t23"],
                       lin_h, brow_lin)
    bcol_lin = fold_h2(W, _taps_w(Pn["w2c2"]), Pn["s22"], Pn["t22"],
                       _taps_w(Pn["w2c21"]), Pn["b2c21"], Pn["s24"], Pn["t24"],
                       lin_w, bcol_lin)

    # ---- H3 / H4: adaptive pool -> conv -> bn -> bilinear interp, fully folded ----
    def fold_hx(L, pool, taps, s, t, pairs, brow):
        Pp = adaptive_pool_matrix(L, pool)                # (pool, L)
        Ui = interp_matrix(pool, L)                       # (L, pool)
        for k, wk in enumerate(taps):
            pairs.append((s[:, None] * wk, Pp.T @ shift_mat(pool, k - 1) @ Ui.T))
        return brow + t[:, None] * (np.ones((1, pool), np.float32) @ Ui.T)

    brow_lin = fold_hx(H, 20, _taps_h(Pn["w3c1"]), Pn["s31"], Pn["t31"], lin_h, brow_lin)
    bcol_lin = fold_hx(W, 20, _taps_w(Pn["w3c2"]), Pn["s32"], Pn["t32"], lin_w, bcol_lin)
    brow_lin = fold_hx(H, 12, _taps_h(Pn["w4c1"]), Pn["s41"], Pn["t41"], lin_h, brow_lin)
    bcol_lin = fold_hx(W, 12, _taps_w(Pn["w4c2"]), Pn["s42"], Pn["t42"], lin_w, bcol_lin)

    # ---- collapse (channel mix x spatial mix) into per-direction operators ----
    # a_flat(row vec, len C*L) @ kron(Wc.T, R)  ==  flatten(Wc @ a @ R)
    def operator(pairs, L):
        op = np.zeros((C * L, C * L), np.float32)
        for Wc, R in pairs:
            op += np.kron(Wc.T, R)
        return op

    EH = np.kron(np.eye(C, dtype=np.float32), E1)         # (C*H, C*HW)
    EW = np.kron(np.eye(C, dtype=np.float32), E2)         # (C*W, C*HW)
    P1 = np.kron(np.eye(C, dtype=np.float32), M1)         # (C*HW, C*H)
    P2 = np.kron(np.eye(C, dtype=np.float32), M2)         # (C*HW, C*W)

    FH_lin = operator(lin_h, H) @ EH
    FW_lin = operator(lin_w, W) @ EW
    FH_sig = operator(sig_h, H) @ EH
    FW_sig = operator(sig_w, W) @ EW

    PAB = np.concatenate([P1, P2], axis=1)                          # (C*HW, C*(H+W))
    F_lin = np.concatenate([FH_lin, FW_lin], axis=0)                # (C*(H+W), C*HW)
    F_sig = np.concatenate([FH_sig, FW_sig], axis=0)
    F = np.concatenate([F_lin, F_sig], axis=1)                      # (C*(H+W), 2*C*HW)

    # pad the inter-dot contraction axis to a lane-tile multiple (128)
    k0 = C * (H + W)
    kab = -(-k0 // 128) * 128
    if kab != k0:
        PAB = np.concatenate([PAB, np.zeros((C * HW, kab - k0), np.float32)], axis=1)
        F = np.concatenate([F, np.zeros((kab - k0, 2 * C * HW), np.float32)], axis=0)

    BLIN = (brow_lin[:, :, None] + bcol_lin[:, None, :]).reshape(1, C * HW)
    BSIG = (brow_sig[:, :, None] + bcol_sig[:, None, :]).reshape(1, C * HW)

    return dict(
        PAB=jnp.asarray(PAB).astype(jnp.bfloat16),     # bf16 matmul operands
        F=jnp.asarray(F).astype(jnp.bfloat16),
        BLIN=jnp.asarray(BLIN, dtype=jnp.float32),     # biases stay f32
        BSIG=jnp.asarray(BSIG, dtype=jnp.float32),
    )


# ----------------------------------------------------------------------------
# Pallas kernel: 2 bf16 MXU dots + sigmoid + elementwise gate
# ----------------------------------------------------------------------------
def _cnblock_kernel(x_ref, pab_ref, f_ref, blin_ref, bsig_ref, o_ref):
    chw = o_ref.shape[-1]
    x = x_ref[...]                                                   # (BR, C*HW) f32
    ab = jnp.dot(x.astype(jnp.bfloat16), pab_ref[...],
                 preferred_element_type=jnp.float32)                 # (BR, KAB)
    g = jnp.dot(ab.astype(jnp.bfloat16), f_ref[...],
                preferred_element_type=jnp.float32)                  # (BR, 2*C*HW)
    gate = (jax.nn.sigmoid(g[:, chw:] + bsig_ref[...])               # H1
            + g[:, :chw] + blin_ref[...])                            # H2 + H3 + H4
    o_ref[...] = x * gate


def _pick_block_rows(n):
    # rows are samples; keep a multiple of 8, target ~128-row (~0.5 MB) blocks,
    # and keep >= 2 grid steps when the batch allows it (v7x: both TensorCores).
    if n <= 8:
        return 8
    return int(min(128, max(8, ((n // 2) // 8) * 8)))


def cnblock_pallas(x, folded):
    N, C, H, W = x.shape
    CHW = C * H * W
    PAB, F = folded["PAB"], folded["F"]
    BLIN, BSIG = folded["BLIN"], folded["BSIG"]

    BR = _pick_block_rows(N)
    n_pad = -(-N // BR) * BR
    x2 = x.reshape(N, CHW)                       # one sample per row, lane-dense
    if n_pad != N:
        x2 = jnp.pad(x2, ((0, n_pad - N), (0, 0)))

    def _const(arr):                             # resident across grid steps
        return pl.BlockSpec(arr.shape, lambda g: (0, 0))

    out2 = pl.pallas_call(
        _cnblock_kernel,
        out_shape=jax.ShapeDtypeStruct((n_pad, CHW), x.dtype),
        grid=(n_pad // BR,),
        in_specs=[
            pl.BlockSpec((BR, CHW), lambda g: (g, 0)),               # x
            _const(PAB), _const(F), _const(BLIN), _const(BSIG),
        ],
        out_specs=pl.BlockSpec((BR, CHW), lambda g: (g, 0)),
        compiler_params=pltpu.CompilerParams(dimension_semantics=("parallel",)),
    )(x2, PAB, F, BLIN, BSIG)
    return out2[:N].reshape(N, C, H, W)


# ----------------------------------------------------------------------------
# Pure-JAX reference mirroring the PyTorch forward (BatchNorm eval mode).
# Computed at HIGHEST precision so it is a trustworthy ground truth.
# ----------------------------------------------------------------------------
_HI = jax.lax.Precision.HIGHEST


def _shift_arr(a, d):
    L = a.shape[-1]
    if d == 0:
        return a
    out = jnp.zeros_like(a)
    if d > 0:
        out = out.at[..., :L - d].set(a[..., d:])
    else:
        out = out.at[..., -d:].set(a[..., :L + d])
    return out


def _conv1d_ref(a, taps, dil=1):
    out = 0.0
    for k in range(3):
        out = out + jnp.einsum("oc,ncl->nol", jnp.asarray(taps[k]),
                               _shift_arr(a, dil * (k - 1)), precision=_HI)
    return out


def cnblock_reference(x, P):
    N, C, H, W = x.shape
    bn = lambda y, s, t: y * s[None, :, None] + t[None, :, None]

    a = x.mean(axis=3)                                             # (N, C, H)
    b = x.mean(axis=2)                                             # (N, C, W)

    # H1
    y1h = bn(_conv1d_ref(a, _taps_h(P["w1c1"])), P["s11"], P["t11"])
    y1w = bn(_conv1d_ref(b, _taps_w(P["w1c2"])), P["s12"], P["t12"])
    W3 = P["w1c3"][:, :, 0, 0]
    s1 = y1h[:, :, :, None] + y1w[:, :, None, :]
    z1 = jnp.einsum("oc,nchw->nohw", W3, s1, precision=_HI) + P["b1c3"][None, :, None, None]
    g1 = jax.nn.sigmoid(z1)

    # H2
    uh = bn(_conv1d_ref(a, _taps_h(P["w2c1"])), P["s21"], P["t21"])
    y2h = bn(_conv1d_ref(uh, _taps_h(P["w2c12"]), dil=2) + P["b2c12"][None, :, None],
             P["s23"], P["t23"])
    uw = bn(_conv1d_ref(b, _taps_w(P["w2c2"])), P["s22"], P["t22"])
    y2w = bn(_conv1d_ref(uw, _taps_w(P["w2c21"]), dil=2) + P["b2c21"][None, :, None],
             P["s24"], P["t24"])
    g2 = y2h[:, :, :, None] + y2w[:, :, None, :]

    # H3 / H4
    def hx(pool_size, wc1, s1v, t1v, wc2, s2v, t2v):
        Ph = jnp.asarray(adaptive_pool_matrix(H, pool_size))
        Pw = jnp.asarray(adaptive_pool_matrix(W, pool_size))
        Uh = jnp.asarray(interp_matrix(pool_size, H))
        Uw = jnp.asarray(interp_matrix(pool_size, W))
        ah = jnp.einsum("nch,ph->ncp", a, Ph, precision=_HI)
        bw = jnp.einsum("ncw,pw->ncp", b, Pw, precision=_HI)
        yh = bn(_conv1d_ref(ah, _taps_h(wc1)), s1v, t1v)
        yw = bn(_conv1d_ref(bw, _taps_w(wc2)), s2v, t2v)
        zh = jnp.einsum("ncp,hp->nch", yh, Uh, precision=_HI)
        zw = jnp.einsum("ncp,wp->ncw", yw, Uw, precision=_HI)
        return zh[:, :, :, None] + zw[:, :, None, :]

    g3 = hx(20, P["w3c1"], P["s31"], P["t31"], P["w3c2"], P["s32"], P["t32"])
    g4 = hx(12, P["w4c1"], P["s41"], P["t41"], P["w4c2"], P["s42"], P["t42"])

    return x * (g1 + g2 + g3 + g4)


# ----------------------------------------------------------------------------
if __name__ == "__main__":
    N, C, H, W = 2, 4, 16, 16          # inplanes == outplanes == C (required by x * gate)

    keys = iter(jax.random.split(jax.random.PRNGKey(0), 64))

    def nk():
        return next(keys)

    def rnd(shape, scale=0.3):
        return scale * jax.random.normal(nk(), shape, dtype=jnp.float32)

    def bn_fold():
        gamma = 1.0 + 0.1 * jax.random.normal(nk(), (C,), jnp.float32)
        beta = 0.1 * jax.random.normal(nk(), (C,), jnp.float32)
        mean = 0.1 * jax.random.normal(nk(), (C,), jnp.float32)
        var = 1.0 + 0.1 * jnp.abs(jax.random.normal(nk(), (C,), jnp.float32))
        s = gamma / jnp.sqrt(var + 1e-5)
        t = beta - mean * s
        return s, t

    P = {}
    for m in (1, 2, 3, 4):
        P[f"w{m}c1"] = rnd((C, C, 3, 1))
        P[f"s{m}1"], P[f"t{m}1"] = bn_fold()
        P[f"w{m}c2"] = rnd((C, C, 1, 3))
        P[f"s{m}2"], P[f"t{m}2"] = bn_fold()
    P["w1c3"] = rnd((C, C, 1, 1)); P["b1c3"] = rnd((C,), 0.1)       # H1 conv3 (+bias)
    P["w2c12"] = rnd((C, C, 3, 1)); P["b2c12"] = rnd((C,), 0.1)     # H2 conv1_2 (+bias)
    P["s23"], P["t23"] = bn_fold()
    P["w2c21"] = rnd((C, C, 1, 3)); P["b2c21"] = rnd((C,), 0.1)     # H2 conv2_1 (+bias)
    P["s24"], P["t24"] = bn_fold()

    x = jax.random.normal(nk(), (N, C, H, W), dtype=jnp.float32)

    folded = fold_cnblock_params(P, C, H, W)
    out = cnblock_pallas(x, folded)
    out = jax.block_until_ready(out)

    ref = cnblock_reference(x, P)
    assert out.shape == (N, C, H, W)
    err = float(jnp.max(jnp.abs(out - ref)))
    # Kernel matmuls use the native bf16-input MXU path (single pass, f32 accumulate);
    # the reference is computed at HIGHEST precision, so allow bf16-level mismatch.
    assert jnp.allclose(out, ref, atol=2e-2, rtol=2e-2), err

    print("KERNEL_OK")
</pallas_src>

<mosaic_0001>
module attributes {stable_mosaic.version = 11 : i64} {
  func.func @_cnblock_kernel(%arg0: i32, %arg1: memref<8x1024xf32, #tpu.memory_space<vmem>>, %arg2: memref<1024x128xbf16, #tpu.memory_space<vmem>>, %arg3: memref<128x2048xbf16, #tpu.memory_space<vmem>>, %arg4: memref<1x1024xf32, #tpu.memory_space<vmem>>, %arg5: memref<1x1024xf32, #tpu.memory_space<vmem>>, %arg6: memref<8x1024xf32, #tpu.memory_space<vmem>>) attributes {dimension_semantics = [#tpu.dimension_semantics<parallel>], iteration_bounds = array<i64: 1>, scalar_prefetch = 0 : i64, scratch_operands = 0 : i64, tpu.core_type = #tpu.core_type<tc>, window_params = [{transform_indices = @transform_0, window_bounds = array<i64: 8, 1024>}, {pipeline_mode = #tpu.pipeline_mode<synchronous>, transform_indices = @transform_1, window_bounds = array<i64: 1024, 128>}, {pipeline_mode = #tpu.pipeline_mode<synchronous>, transform_indices = @transform_2, window_bounds = array<i64: 128, 2048>}, {pipeline_mode = #tpu.pipeline_mode<synchronous>, transform_indices = @transform_3, window_bounds = array<i64: 1, 1024>}, {pipeline_mode = #tpu.pipeline_mode<synchronous>, transform_indices = @transform_4, window_bounds = array<i64: 1, 1024>}, {transform_indices = @transform_5, window_bounds = array<i64: 8, 1024>}]} {
    %c0 = arith.constant 0 : index
    %c0_0 = arith.constant 0 : index
    %0 = vector.load %arg1[%c0, %c0_0] : memref<8x1024xf32, #tpu.memory_space<vmem>>, vector<8x1024xf32>
    %1 = arith.truncf %0 : vector<8x1024xf32> to vector<8x1024xbf16>
    %c0_1 = arith.constant 0 : index
    %c0_2 = arith.constant 0 : index
    %2 = vector.load %arg2[%c0_1, %c0_2] : memref<1024x128xbf16, #tpu.memory_space<vmem>>, vector<1024x128xbf16>
    %cst = arith.constant dense<0.000000e+00> : vector<8x128xf32>
    %3 = tpu.matmul %1, %2, %cst {dimension_numbers = #tpu.dot_dimension_numbers<[1], [0], [0], [1], [0, 0, 1, 1], [], []>} : vector<8x1024xbf16>, vector<1024x128xbf16>, vector<8x128xf32> -> vector<8x128xf32>
    %4 = arith.truncf %3 : vector<8x128xf32> to vector<8x128xbf16>
    %c0_3 = arith.constant 0 : index
    %c0_4 = arith.constant 0 : index
    %5 = vector.load %arg3[%c0_3, %c0_4] : memref<128x2048xbf16, #tpu.memory_space<vmem>>, vector<128x2048xbf16>
    %cst_5 = arith.constant dense<0.000000e+00> : vector<8x2048xf32>
    %6 = tpu.matmul %4, %5, %cst_5 {dimension_numbers = #tpu.dot_dimension_numbers<[1], [0], [0], [1], [0, 0, 1, 1], [], []>} : vector<8x128xbf16>, vector<128x2048xbf16>, vector<8x2048xf32> -> vector<8x2048xf32>
    %7 = vector.extract_strided_slice %6 {offsets = [0, 1024], sizes = [8, 1024], strides = [1, 1]} : vector<8x2048xf32> to vector<8x1024xf32>
    %c0_6 = arith.constant 0 : index
    %c0_7 = arith.constant 0 : index
    %8 = vector.load %arg5[%c0_6, %c0_7] : memref<1x1024xf32, #tpu.memory_space<vmem>>, vector<1x1024xf32>
    %9 = vector.broadcast %8 : vector<1x1024xf32> to vector<8x1024xf32>
    %10 = arith.addf %7, %9 : vector<8x1024xf32>
    %11 = arith.negf %10 : vector<8x1024xf32>
    %12 = math.exp %11 : vector<8x1024xf32>
    %cst_8 = arith.constant 1.000000e+00 : f32
    %13 = vector.broadcast %cst_8 : f32 to vector<8x1024xf32>
    %14 = arith.addf %13, %12 : vector<8x1024xf32>
    %15 = arith.divf %13, %14 : vector<8x1024xf32>
    %16 = vector.extract_strided_slice %6 {offsets = [0, 0], sizes = [8, 1024], strides = [1, 1]} : vector<8x2048xf32> to vector<8x1024xf32>
    %17 = arith.addf %15, %16 : vector<8x1024xf32>
    %c0_9 = arith.constant 0 : index
    %c0_10 = arith.constant 0 : index
    %18 = vector.load %arg4[%c0_9, %c0_10] : memref<1x1024xf32, #tpu.memory_space<vmem>>, vector<1x1024xf32>
    %19 = vector.broadcast %18 : vector<1x1024xf32> to vector<8x1024xf32>
    %20 = arith.addf %17, %19 : vector<8x1024xf32>
    %21 = arith.mulf %0, %20 : vector<8x1024xf32>
    %c0_11 = arith.constant 0 : index
    %c0_12 = arith.constant 0 : index
    %22 = vector.load %arg6[%c0_11, %c0_12] : memref<8x1024xf32, #tpu.memory_space<vmem>>, vector<8x1024xf32>
    tpu.vector_store %arg6[%c0_11, %c0_12], %21 {strides = array<i32>} : memref<8x1024xf32, #tpu.memory_space<vmem>>, vector<8x1024xf32>,
    return
  }
  func.func @transform_0(%arg0: i32) -> (i32, i32) {
    %c0_i32 = arith.constant 0 : i32
    %c0_i32_0 = arith.constant 0 : i32
    return %arg0, %c0_i32 : i32, i32
  }
  func.func @transform_1(%arg0: i32) -> (i32, i32) {
    %c0_i32 = arith.constant 0 : i32
    %c0_i32_0 = arith.constant 0 : i32
    %c0_i32_1 = arith.constant 0 : i32
    return %c0_i32, %c0_i32_0 : i32, i32
  }
  func.func @transform_2(%arg0: i32) -> (i32, i32) {
    %c0_i32 = arith.constant 0 : i32
    %c0_i32_0 = arith.constant 0 : i32
    %c0_i32_1 = arith.constant 0 : i32
    return %c0_i32, %c0_i32_0 : i32, i32
  }
  func.func @transform_3(%arg0: i32) -> (i32, i32) {
    %c0_i32 = arith.constant 0 : i32
    %c0_i32_0 = arith.constant 0 : i32
    %c0_i32_1 = arith.constant 0 : i32
    return %c0_i32, %c0_i32_0 : i32, i32
  }
  func.func @transform_4(%arg0: i32) -> (i32, i32) {
    %c0_i32 = arith.constant 0 : i32
    %c0_i32_0 = arith.constant 0 : i32
    %c0_i32_1 = arith.constant 0 : i32
    return %c0_i32, %c0_i32_0 : i32, i32
  }
  func.func @transform_5(%arg0: i32) -> (i32, i32) {
    %c0_i32 = arith.constant 0 : i32
    %c0_i32_0 = arith.constant 0 : i32
    return %arg0, %c0_i32 : i32, i32
  }
}

</mosaic_0001>

<llo_original>
// kernel: tpu_custom_call.1
$region0: #{tpu_custom_call.1}
  #allocation0 [shape = 'u32[]', space=smem, size = 0x4, offset = 0x4, fixed_abs, tag = 'smem constant byte address 0x4 - core index']
  #allocation1 [shape = 'u32[144,128]{1,0:T(1,128)}', space=vmem, size = 0x12000, scoped, tag = 'internal scratch']
  %s0 = inlined_call_operand.hbm [shape: f32[8,1024], index: 0, kind: input, shape index: {}]
  %s1 = inlined_call_operand.hbm [shape: bf16[1024,128], index: 1, kind: input, shape index: {}]
  %s2 = inlined_call_operand.hbm [shape: bf16[128,2048], index: 2, kind: input, shape index: {}]
  %s3 = inlined_call_operand.vmem [shape: f32[1,1024], index: 3, kind: input, shape index: {}]
  %s4 = inlined_call_operand.hbm [shape: f32[1,1024], index: 4, kind: input, shape index: {}]
  %s5 = inlined_call_operand.hbm [shape: f32[8,1024], index: 5, kind: output, shape index: {}]
  %s6 = sld [smem:[#allocation0]]
  $region46: #{tpu_custom_call.1} parent=0
    _
  %s8 = ssub.s32 1, %s6
  %s9 = scalar_select 0, %s8, %s6
  $region1: #{tpu_custom_call.1} parent=0
    #allocation2 [shape = 'u8[32768]{0}', space=vmem, size = 0x8000, scoped, tag = 'input window, operand 0, single buffered']
    #allocation3 [shape = 's32[1]{0}', space=sflag, size = 0x4, scoped, tag = 'scoped memory for tpu_custom_call.1']
    #allocation4 [shape = 's32[1]{0}', space=sflag, size = 0x4, scoped, tag = 'scoped memory for tpu_custom_call.1']
    #allocation5 [shape = 'u8[262144]{0}', space=vmem, size = 0x40000, scoped, tag = 'input window, operand 1, single buffered']
    #allocation6 [shape = 's32[1]{0}', space=sflag, size = 0x4, scoped, tag = 'scoped memory for tpu_custom_call.1']
    #allocation7 [shape = 'u8[524288]{0}', space=vmem, size = 0x80000, scoped, tag = 'input window, operand 2, single buffered']
    #allocation8 [shape = 'u8[4096]{0}', space=vmem, size = 0x1000, scoped, tag = 'input window, operand 4, single buffered']
    #allocation9 [shape = 's32[1]{0}', space=sflag, size = 0x4, scoped, tag = 'scoped memory for tpu_custom_call.1']
    #allocation10 [shape = 'u8[32768]{0}', space=vmem, size = 0x8000, scoped, tag = 'output window, operand 0, single buffered']
    %10 = vsyncpa [#allocation3], 0
    %11 = vsyncpa [#allocation6], 0
    %12 = vsyncpa [#allocation9], 0
    %13 = vsyncpa [#allocation4], 0
    // Predicated region
    $region2: #{tpu_custom_call.1} parent=1 // pred_check
      _
    $region3: #{tpu_custom_call.1} parent=1 // pred_check_branch
      %15 = sbr.rel (0) target = $region5
    $region4: #{tpu_custom_call.1} parent=1 // pred_region
      %s17 = ssub.s32 1024, 1024
      %18 = vsyncadd [#allocation3], %s17
      %s20 = sshll.u32 [#allocation2], 4
      %s21 = int_to_ptr.vmem [resolvable:$true] %s20
      %23 = dma.hbm_to_vmem [thread:$0]  %s0, 1024, %s21, [#allocation3]
    $region5: #{tpu_custom_call.1} parent=1 // pred_fallthru
      _
    // Predicated region
    $region6: #{tpu_custom_call.1} parent=1 // pred_check
      _
    $region7: #{tpu_custom_call.1} parent=1 // pred_check_branch
      %25 = sbr.rel (0) target = $region9
    $region8: #{tpu_custom_call.1} parent=1 // pred_region
      %s27 = ssub.s32 8192, 8192
      %28 = vsyncadd [#allocation6], %s27
      %s29 = sshll.u32 [#allocation5], 4
      %s30 = int_to_ptr.vmem [resolvable:$true] %s29
      %35 = dma.hbm_to_vmem [thread:$0]  %s1, 8192, %s30, [#allocation6], 64, 64, 4
    $region9: #{tpu_custom_call.1} parent=1 // pred_fallthru
      _
    // Predicated region
    $region10: #{tpu_custom_call.1} parent=1 // pred_check
      _
    $region11: #{tpu_custom_call.1} parent=1 // pred_check_branch
      %37 = sbr.rel (0) target = $region13
    $region12: #{tpu_custom_call.1} parent=1 // pred_region
      %s39 = ssub.s32 16384, 16384
      %40 = vsyncadd [#allocation6], %s39
      %s41 = sshll.u32 [#allocation7], 4
      %s42 = int_to_ptr.vmem [resolvable:$true] %s41
      %47 = dma.hbm_to_vmem [thread:$0]  %s2, 16384, %s42, [#allocation6], 1024, 1024, 64
    $region13: #{tpu_custom_call.1} parent=1 // pred_fallthru
      _
    // Predicated region
    $region14: #{tpu_custom_call.1} parent=1 // pred_check
      _
    $region15: #{tpu_custom_call.1} parent=1 // pred_check_branch
      %49 = sbr.rel (0) target = $region17
    $region16: #{tpu_custom_call.1} parent=1 // pred_region
      _
    $region17: #{tpu_custom_call.1} parent=1 // pred_fallthru
      _
    // Predicated region
    $region18: #{tpu_custom_call.1} parent=1 // pred_check
      _
    $region19: #{tpu_custom_call.1} parent=1 // pred_check_branch
      %51 = sbr.rel (0) target = $region21
    $region20: #{tpu_custom_call.1} parent=1 // pred_region
      %s53 = ssub.s32 128, 128
      %54 = vsyncadd [#allocation9], %s53
      %s56 = sshll.u32 [#allocation8], 4
      %s57 = int_to_ptr.vmem [resolvable:$true] %s56
      %59 = dma.hbm_to_vmem [thread:$0]  %s4, 128, %s57, [#allocation9]
    $region21: #{tpu_custom_call.1} parent=1 // pred_fallthru
      _
    // Predicated region
    $region22: #{tpu_custom_call.1} parent=1 // pred_check
      _
    $region23: #{tpu_custom_call.1} parent=1 // pred_check_branch
      %61 = sbr.rel (0) target = $region25
    $region24: #{tpu_custom_call.1} parent=1 // pred_region
      %62 = dma.done [#allocation3], 1024
    $region25: #{tpu_custom_call.1} parent=1 // pred_fallthru
      _
    // Predicated region
    $region26: #{tpu_custom_call.1} parent=1 // pred_check
      _
    $region27: #{tpu_custom_call.1} parent=1 // pred_check_branch
      %64 = sbr.rel (0) target = $region29
    $region28: #{tpu_custom_call.1} parent=1 // pred_region
      %65 = dma.done [#allocation6], 8192
    $region29: #{tpu_custom_call.1} parent=1 // pred_fallthru
      _
    // Predicated region
    $region30: #{tpu_custom_call.1} parent=1 // pred_check
      _
    $region31: #{tpu_custom_call.1} parent=1 // pred_check_branch
      %67 = sbr.rel (0) target = $region33
    $region32: #{tpu_custom_call.1} parent=1 // pred_region
      %68 = dma.done [#allocation6], 16384
    $region33: #{tpu_custom_call.1} parent=1 // pred_fallthru
      _
    // Predicated region
    $region34: #{tpu_custom_call.1} parent=1 // pred_check
      _
    $region35: #{tpu_custom_call.1} parent=1 // pred_check_branch
      %70 = sbr.rel (0) target = $region37
    $region36: #{tpu_custom_call.1} parent=1 // pred_region
      %71 = dma.done [#allocation9], 128
    $region37: #{tpu_custom_call.1} parent=1 // pred_fallthru
      _
    %v73 = vld [vmem:[#allocation2] sm:$0xff]
    %v74 = vld [vmem:[#allocation2 + $0x8] sm:$0xff]
    %v75 = vld [vmem:[#allocation2 + $0x10] sm:$0xff]
    %v76 = vld [vmem:[#allocation2 + $0x18] sm:$0xff]
    %v77 = vld [vmem:[#allocation2 + $0x20] sm:$0xff]
    %v78 = vld [vmem:[#allocation2 + $0x28] sm:$0xff]
    %v79 = vld [vmem:[#allocation2 + $0x30] sm:$0xff]
    %v80 = vld [vmem:[#allocation2 + $0x38] sm:$0xff]
    %v81 = vpack.c.bf16 %v73, %v73
    %v82 = vpack.c.bf16 %v74, %v74
    %v83 = vpack.c.bf16 %v75, %v75
    %v84 = vpack.c.bf16 %v76, %v76
    %v85 = vpack.c.bf16 %v77, %v77
    %v86 = vpack.c.bf16 %v78, %v78
    %v87 = vpack.c.bf16 %v79, %v79
    %v88 = vpack.c.bf16 %v80, %v80
    %v89 = vld [vmem:[#allocation5] sm:$0xf]
    %v90 = vld [vmem:[#allocation5 + $0x4] sm:$0xf]
    %v91 = vld [vmem:[#allocation5 + $0x8] sm:$0xf]
    %v92 = vld [vmem:[#allocation5 + $0xc] sm:$0xf]
    %v93 = vld [vmem:[#allocation5 + $0x10] sm:$0xf]
    %v94 = vld [vmem:[#allocation5 + $0x14] sm:$0xf]
    %v95 = vld [vmem:[#allocation5 + $0x18] sm:$0xf]
    %v96 = vld [vmem:[#allocation5 + $0x1c] sm:$0xf]
    %v97 = vld [vmem:[#allocation5 + $0x20] sm:$0xf]
    %v98 = vld [vmem:[#allocation5 + $0x24] sm:$0xf]
    %v99 = vld [vmem:[#allocation5 + $0x28] sm:$0xf]
    %v100 = vld [vmem:[#allocation5 + $0x2c] sm:$0xf]
    %v101 = vld [vmem:[#allocation5 + $0x30] sm:$0xf]
    %v102 = vld [vmem:[#allocation5 + $0x34] sm:$0xf]
    %v103 = vld [vmem:[#allocation5 + $0x38] sm:$0xf]
    %v104 = vld [vmem:[#allocation5 + $0x3c] sm:$0xf]
    %v105 = vld [vmem:[#allocation5 + $0x40] sm:$0xf]
    %v106 = vld [vmem:[#allocation5 + $0x44] sm:$0xf]
    %v107 = vld [vmem:[#allocation5 + $0x48] sm:$0xf]
    %v108 = vld [vmem:[#allocation5 + $0x4c] sm:$0xf]
    %v109 = vld [vmem:[#allocation5 + $0x50] sm:$0xf]
    %v110 = vld [vmem:[#allocation5 + $0x54] sm:$0xf]
    %v111 = vld [vmem:[#allocation5 + $0x58] sm:$0xf]
    %v112 = vld [vmem:[#allocation5 + $0x5c] sm:$0xf]
    %v113 = vld [vmem:[#allocation5 + $0x60] sm:$0xf]
    %v114 = vld [vmem:[#allocation5 + $0x64] sm:$0xf]
    %v115 = vld [vmem:[#allocation5 + $0x68] sm:$0xf]
    %v116 = vld [vmem:[#allocation5 + $0x6c] sm:$0xf]
    %v117 = vld [vmem:[#allocation5 + $0x70] sm:$0xf]
    %v118 = vld [vmem:[#allocation5 + $0x74] sm:$0xf]
    %v119 = vld [vmem:[#allocation5 + $0x78] sm:$0xf]
    %v120 = vld [vmem:[#allocation5 + $0x7c] sm:$0xf]
    %v121 = vld [vmem:[#allocation5 + $0x80] sm:$0xf]
    %v122 = vld [vmem:[#allocation5 + $0x84] sm:$0xf]
    %v123 = vld [vmem:[#allocation5 + $0x88] sm:$0xf]
    %v124 = vld [vmem:[#allocation5 + $0x8c] sm:$0xf]
    %v125 = vld [vmem:[#allocation5 + $0x90] sm:$0xf]
    %v126 = vld [vmem:[#allocation5 + $0x94] sm:$0xf]
    %v127 = vld [vmem:[#allocation5 + $0x98] sm:$0xf]
    %v128 = vld [vmem:[#allocation5 + $0x9c] sm:$0xf]
    %v129 = vld [vmem:[#allocation5 + $0xa0] sm:$0xf]
    %v130 = vld [vmem:[#allocation5 + $0xa4] sm:$0xf]
    %v131 = vld [vmem:[#allocation5 + $0xa8] sm:$0xf]
    %v132 = vld [vmem:[#allocation5 + $0xac] sm:$0xf]
    %v133 = vld [vmem:[#allocation5 + $0xb0] sm:$0xf]
    %v134 = vld [vmem:[#allocation5 + $0xb4] sm:$0xf]
    %v135 = vld [vmem:[#allocation5 + $0xb8] sm:$0xf]
    %v136 = vld [vmem:[#allocation5 + $0xbc] sm:$0xf]
    %v137 = vld [vmem:[#allocation5 + $0xc0] sm:$0xf]
    %v138 = vld [vmem:[#allocation5 + $0xc4] sm:$0xf]
    %v139 = vld [vmem:[#allocation5 + $0xc8] sm:$0xf]
    %v140 = vld [vmem:[#allocation5 + $0xcc] sm:$0xf]
    %v141 = vld [vmem:[#allocation5 + $0xd0] sm:$0xf]
    %v142 = vld [vmem:[#allocation5 + $0xd4] sm:$0xf]
    %v143 = vld [vmem:[#allocation5 + $0xd8] sm:$0xf]
    %v144 = vld [vmem:[#allocation5 + $0xdc] sm:$0xf]
    %v145 = vld [vmem:[#allocation5 + $0xe0] sm:$0xf]
    %v146 = vld [vmem:[#allocation5 + $0xe4] sm:$0xf]
    %v147 = vld [vmem:[#allocation5 + $0xe8] sm:$0xf]
    %v148 = vld [vmem:[#allocation5 + $0xec] sm:$0xf]
    %v149 = vld [vmem:[#allocation5 + $0xf0] sm:$0xf]
    %v150 = vld [vmem:[#allocation5 + $0xf4] sm:$0xf]
    %v151 = vld [vmem:[#allocation5 + $0xf8] sm:$0xf]
    %v152 = vld [vmem:[#allocation5 + $0xfc] sm:$0xf]
    %v153 = vld [vmem:[#allocation5 + $0x100] sm:$0xf]
    %v154 = vld [vmem:[#allocation5 + $0x104] sm:$0xf]
    %v155 = vld [vmem:[#allocation5 + $0x108] sm:$0xf]
    %v156 = vld [vmem:[#allocation5 + $0x10c] sm:$0xf]
    %v157 = vld [vmem:[#allocation5 + $0x110] sm:$0xf]
    %v158 = vld [vmem:[#allocation5 + $0x114] sm:$0xf]
    %v159 = vld [vmem:[#allocation5 + $0x118] sm:$0xf]
    %v160 = vld [vmem:[#allocation5 + $0x11c] sm:$0xf]
    %v161 = vld [vmem:[#allocation5 + $0x120] sm:$0xf]
    %v162 = vld [vmem:[#allocation5 + $0x124] sm:$0xf]
    %v163 = vld [vmem:[#allocation5 + $0x128] sm:$0xf]
    %v164 = vld [vmem:[#allocation5 + $0x12c] sm:$0xf]
    %v165 = vld [vmem:[#allocation5 + $0x130] sm:$0xf]
    %v166 = vld [vmem:[#allocation5 + $0x134] sm:$0xf]
    %v167 = vld [vmem:[#allocation5 + $0x138] sm:$0xf]
    %v168 = vld [vmem:[#allocation5 + $0x13c] sm:$0xf]
    %v169 = vld [vmem:[#allocation5 + $0x140] sm:$0xf]
    %v170 = vld [vmem:[#allocation5 + $0x144] sm:$0xf]
    %v171 = vld [vmem:[#allocation5 + $0x148] sm:$0xf]
    %v172 = vld [vmem:[#allocation5 + $0x14c] sm:$0xf]
    %v173 = vld [vmem:[#allocation5 + $0x150] sm:$0xf]
    %v174 = vld [vmem:[#allocation5 + $0x154] sm:$0xf]
    %v175 = vld [vmem:[#allocation5 + $0x158] sm:$0xf]
    %v176 = vld [vmem:[#allocation5 + $0x15c] sm:$0xf]
    %v177 = vld [vmem:[#allocation5 + $0x160] sm:$0xf]
    %v178 = vld [vmem:[#allocation5 + $0x164] sm:$0xf]
    %v179 = vld [vmem:[#allocation5 + $0x168] sm:$0xf]
    %v180 = vld [vmem:[#allocation5 + $0x16c] sm:$0xf]
    %v181 = vld [vmem:[#allocation5 + $0x170] sm:$0xf]
    %v182 = vld [vmem:[#allocation5 + $0x174] sm:$0xf]
    %v183 = vld [vmem:[#allocation5 + $0x178] sm:$0xf]
    %v184 = vld [vmem:[#allocation5 + $0x17c] sm:$0xf]
    %v185 = vld [vmem:[#allocation5 + $0x180] sm:$0xf]
    %v186 = vld [vmem:[#allocation5 + $0x184] sm:$0xf]
    %v187 = vld [vmem:[#allocation5 + $0x188] sm:$0xf]
    %v188 = vld [vmem:[#allocation5 + $0x18c] sm:$0xf]
    %v189 = vld [vmem:[#allocation5 + $0x190] sm:$0xf]
    %v190 = vld [vmem:[#allocation5 + $0x194] sm:$0xf]
    %v191 = vld [vmem:[#allocation5 + $0x198] sm:$0xf]
    %v192 = vld [vmem:[#allocation5 + $0x19c] sm:$0xf]
    %v193 = vld [vmem:[#allocation5 + $0x1a0] sm:$0xf]
    %v194 = vld [vmem:[#allocation5 + $0x1a4] sm:$0xf]
    %v195 = vld [vmem:[#allocation5 + $0x1a8] sm:$0xf]
    %v196 = vld [vmem:[#allocation5 + $0x1ac] sm:$0xf]
    %v197 = vld [vmem:[#allocation5 + $0x1b0] sm:$0xf]
    %v198 = vld [vmem:[#allocation5 + $0x1b4] sm:$0xf]
    %v199 = vld [vmem:[#allocation5 + $0x1b8] sm:$0xf]
    %v200 = vld [vmem:[#allocation5 + $0x1bc] sm:$0xf]
    %v201 = vld [vmem:[#allocation5 + $0x1c0] sm:$0xf]
    %v202 = vld [vmem:[#allocation5 + $0x1c4] sm:$0xf]
    %v203 = vld [vmem:[#allocation5 + $0x1c8] sm:$0xf]
    %v204 = vld [vmem:[#allocation5 + $0x1cc] sm:$0xf]
    %v205 = vld [vmem:[#allocation5 + $0x1d0] sm:$0xf]
    %v206 = vld [vmem:[#allocation5 + $0x1d4] sm:$0xf]
    %v207 = vld [vmem:[#allocation5 + $0x1d8] sm:$0xf]
    %v208 = vld [vmem:[#allocation5 + $0x1dc] sm:$0xf]
    %v209 = vld [vmem:[#allocation5 + $0x1e0] sm:$0xf]
    %v210 = vld [vmem:[#allocation5 + $0x1e4] sm:$0xf]
    %v211 = vld [vmem:[#allocation5 + $0x1e8] sm:$0xf]
    %v212 = vld [vmem:[#allocation5 + $0x1ec] sm:$0xf]
    %v213 = vld [vmem:[#allocation5 + $0x1f0] sm:$0xf]
    %v214 = vld [vmem:[#allocation5 + $0x1f4] sm:$0xf]
    %v215 = vld [vmem:[#allocation5 + $0x1f8] sm:$0xf]
    %v216 = vld [vmem:[#allocation5 + $0x1fc] sm:$0xf]
    %v345 = vunpack.c.l.b16 %v89
    %v346 = vunpack.c.l.b16 %v90
    %v347 = vunpack.c.l.b16 %v91
    %v348 = vunpack.c.l.b16 %v92
    %v349 = vunpack.c.l.b16 %v93
    %v350 = vunpack.c.l.b16 %v94
    %v351 = vunpack.c.l.b16 %v95
    %v352 = vunpack.c.l.b16 %v96
    %v353 = vunpack.c.l.b16 %v97
    %v354 = vunpack.c.l.b16 %v98
    %v355 = vunpack.c.l.b16 %v99
    %v356 = vunpack.c.l.b16 %v100
    %v357 = vunpack.c.l.b16 %v101
    %v358 = vunpack.c.l.b16 %v102
    %v359 = vunpack.c.l.b16 %v103
    %v360 = vunpack.c.l.b16 %v104
    %v361 = vunpack.c.l.b16 %v105
    %v362 = vunpack.c.l.b16 %v106
    %v363 = vunpack.c.l.b16 %v107
    %v364 = vunpack.c.l.b16 %v108
    %v365 = vunpack.c.l.b16 %v109
    %v366 = vunpack.c.l.b16 %v110
    %v367 = vunpack.c.l.b16 %v111
    %v368 = vunpack.c.l.b16 %v112
    %v369 = vunpack.c.l.b16 %v113
    %v370 = vunpack.c.l.b16 %v114
    %v371 = vunpack.c.l.b16 %v115
    %v372 = vunpack.c.l.b16 %v116
    %v373 = vunpack.c.l.b16 %v117
    %v374 = vunpack.c.l.b16 %v118
    %v375 = vunpack.c.l.b16 %v119
    %v376 = vunpack.c.l.b16 %v120
    %v377 = vunpack.c.l.b16 %v121
    %v378 = vunpack.c.l.b16 %v122
    %v379 = vunpack.c.l.b16 %v123
    %v380 = vunpack.c.l.b16 %v124
    %v381 = vunpack.c.l.b16 %v125
    %v382 = vunpack.c.l.b16 %v126
    %v383 = vunpack.c.l.b16 %v127
    %v384 = vunpack.c.l.b16 %v128
    %v385 = vunpack.c.l.b16 %v129
    %v386 = vunpack.c.l.b16 %v130
    %v387 = vunpack.c.l.b16 %v131
    %v388 = vunpack.c.l.b16 %v132
    %v389 = vunpack.c.l.b16 %v133
    %v390 = vunpack.c.l.b16 %v134
    %v391 = vunpack.c.l.b16 %v135
    %v392 = vunpack.c.l.b16 %v136
    %v393 = vunpack.c.l.b16 %v137
    %v394 = vunpack.c.l.b16 %v138
    %v395 = vunpack.c.l.b16 %v139
    %v396 = vunpack.c.l.b16 %v140
    %v397 = vunpack.c.l.b16 %v141
    %v398 = vunpack.c.l.b16 %v142
    %v399 = vunpack.c.l.b16 %v143
    %v400 = vunpack.c.l.b16 %v144
    %v401 = vunpack.c.l.b16 %v145
    %v402 = vunpack.c.l.b16 %v146
    %v403 = vunpack.c.l.b16 %v147
    %v404 = vunpack.c.l.b16 %v148
    %v405 = vunpack.c.l.b16 %v149
    %v406 = vunpack.c.l.b16 %v150
    %v407 = vunpack.c.l.b16 %v151
    %v408 = vunpack.c.l.b16 %v152
    %v409 = vunpack.c.l.b16 %v153
    %v410 = vunpack.c.l.b16 %v154
    %v411 = vunpack.c.l.b16 %v155
    %v412 = vunpack.c.l.b16 %v156
    %v413 = vunpack.c.l.b16 %v157
    %v414 = vunpack.c.l.b16 %v158
    %v415 = vunpack.c.l.b16 %v159
    %v416 = vunpack.c.l.b16 %v160
    %v417 = vunpack.c.l.b16 %v161
    %v418 = vunpack.c.l.b16 %v162
    %v419 = vunpack.c.l.b16 %v163
    %v420 = vunpack.c.l.b16 %v164
    %v421 = vunpack.c.l.b16 %v165
    %v422 = vunpack.c.l.b16 %v166
    %v423 = vunpack.c.l.b16 %v167
    %v424 = vunpack.c.l.b16 %v168
    %v425 = vunpack.c.l.b16 %v169
    %v426 = vunpack.c.l.b16 %v170
    %v427 = vunpack.c.l.b16 %v171
    %v428 = vunpack.c.l.b16 %v172
    %v429 = vunpack.c.l.b16 %v173
    %v430 = vunpack.c.l.b16 %v174
    %v431 = vunpack.c.l.b16 %v175
    %v432 = vunpack.c.l.b16 %v176
    %v433 = vunpack.c.l.b16 %v177
    %v434 = vunpack.c.l.b16 %v178
    %v435 = vunpack.c.l.b16 %v179
    %v436 = vunpack.c.l.b16 %v180
    %v437 = vunpack.c.l.b16 %v181
    %v438 = vunpack.c.l.b16 %v182
    %v439 = vunpack.c.l.b16 %v183
    %v440 = vunpack.c.l.b16 %v184
    %v441 = vunpack.c.l.b16 %v185
    %v442 = vunpack.c.l.b16 %v186
    %v443 = vunpack.c.l.b16 %v187
    %v444 = vunpack.c.l.b16 %v188
    %v445 = vunpack.c.l.b16 %v189
    %v446 = vunpack.c.l.b16 %v190
    %v447 = vunpack.c.l.b16 %v191
    %v448 = vunpack.c.l.b16 %v192
    %v449 = vunpack.c.l.b16 %v193
    %v450 = vunpack.c.l.b16 %v194
    %v451 = vunpack.c.l.b16 %v195
    %v452 = vunpack.c.l.b16 %v196
    %v453 = vunpack.c.l.b16 %v197
    %v454 = vunpack.c.l.b16 %v198
    %v455 = vunpack.c.l.b16 %v199
    %v456 = vunpack.c.l.b16 %v200
    %v457 = vunpack.c.l.b16 %v201
    %v458 = vunpack.c.l.b16 %v202
    %v459 = vunpack.c.l.b16 %v203
    %v460 = vunpack.c.l.b16 %v204
    %v461 = vunpack.c.l.b16 %v205
    %v462 = vunpack.c.l.b16 %v206
    %v463 = vunpack.c.l.b16 %v207
    %v464 = vunpack.c.l.b16 %v208
    %v465 = vunpack.c.l.b16 %v209
    %v466 = vunpack.c.l.b16 %v210
    %v467 = vunpack.c.l.b16 %v211
    %v468 = vunpack.c.l.b16 %v212
    %v469 = vunpack.c.l.b16 %v213
    %v470 = vunpack.c.l.b16 %v214
    %v471 = vunpack.c.l.b16 %v215
    %v472 = vunpack.c.l.b16 %v216
    %v473 = vpack.c.b16 %v346, %v345
    %v474 = vpack.c.b16 %v348, %v347
    %v475 = vpack.c.b16 %v350, %v349
    %v476 = vpack.c.b16 %v352, %v351
    %v477 = vpack.c.b16 %v354, %v353
    %v478 = vpack.c.b16 %v356, %v355
    %v479 = vpack.c.b16 %v358, %v357
    %v480 = vpack.c.b16 %v360, %v359
    %v481 = vpack.c.b16 %v362, %v361
    %v482 = vpack.c.b16 %v364, %v363
    %v483 = vpack.c.b16 %v366, %v365
    %v484 = vpack.c.b16 %v368, %v367
    %v485 = vpack.c.b16 %v370, %v369
    %v486 = vpack.c.b16 %v372, %v371
    %v487 = vpack.c.b16 %v374, %v373
    %v488 = vpack.c.b16 %v376, %v375
    %v489 = vpack.c.b16 %v378, %v377
    %v490 = vpack.c.b16 %v380, %v379
    %v491 = vpack.c.b16 %v382, %v381
    %v492 = vpack.c.b16 %v384, %v383
    %v493 = vpack.c.b16 %v386, %v385
    %v494 = vpack.c.b16 %v388, %v387
    %v495 = vpack.c.b16 %v390, %v389
    %v496 = vpack.c.b16 %v392, %v391
    %v497 = vpack.c.b16 %v394, %v393
    %v498 = vpack.c.b16 %v396, %v395
    %v499 = vpack.c.b16 %v398, %v397
    %v500 = vpack.c.b16 %v400, %v399
    %v501 = vpack.c.b16 %v402, %v401
    %v502 = vpack.c.b16 %v404, %v403
    %v503 = vpack.c.b16 %v406, %v405
    %v504 = vpack.c.b16 %v408, %v407
    %v505 = vpack.c.b16 %v410, %v409
    %v506 = vpack.c.b16 %v412, %v411
    %v507 = vpack.c.b16 %v414, %v413
    %v508 = vpack.c.b16 %v416, %v415
    %v509 = vpack.c.b16 %v418, %v417
    %v510 = vpack.c.b16 %v420, %v419
    %v511 = vpack.c.b16 %v422, %v421
    %v512 = vpack.c.b16 %v424, %v423
    %v513 = vpack.c.b16 %v426, %v425
    %v514 = vpack.c.b16 %v428, %v427
    %v515 = vpack.c.b16 %v430, %v429
    %v516 = vpack.c.b16 %v432, %v431
    %v517 = vpack.c.b16 %v434, %v433
    %v518 = vpack.c.b16 %v436, %v435
    %v519 = vpack.c.b16 %v438, %v437
    %v520 = vpack.c.b16 %v440, %v439
    %v521 = vpack.c.b16 %v442, %v441
    %v522 = vpack.c.b16 %v444, %v443
    %v523 = vpack.c.b16 %v446, %v445
    %v524 = vpack.c.b16 %v448, %v447
    %v525 = vpack.c.b16 %v450, %v449
    %v526 = vpack.c.b16 %v452, %v451
    %v527 = vpack.c.b16 %v454, %v453
    %v528 = vpack.c.b16 %v456, %v455
    %v529 = vpack.c.b16 %v458, %v457
    %v530 = vpack.c.b16 %v460, %v459
    %v531 = vpack.c.b16 %v462, %v461
    %v532 = vpack.c.b16 %v464, %v463
    %v533 = vpack.c.b16 %v466, %v465
    %v534 = vpack.c.b16 %v468, %v467
    %v535 = vpack.c.b16 %v470, %v469
    %v536 = vpack.c.b16 %v472, %v471
    %601 = vmatprep.subr.bf16.mxu0 0
    %602 = vmatpush1.bf16.msra.mxu0 %v473
    %603 = vmatprep.subr.bf16.mxu0 0
    %604 = vmatpush1.bf16.msra.mxu0 %v474
    %605 = vmatprep.subr.bf16.mxu0 0
    %606 = vmatpush1.bf16.msra.mxu0 %v475
    %607 = vmatprep.subr.bf16.mxu0 0
    %608 = vmatpush1.bf16.msra.mxu0 %v476
    %609 = vmatprep.subr.bf16.mxu0 0
    %610 = vmatpush1.bf16.msra.mxu0 %v477
    %611 = vmatprep.subr.bf16.mxu0 0
    %612 = vmatpush1.bf16.msra.mxu0 %v478
    %613 = vmatprep.subr.bf16.mxu0 0
    %614 = vmatpush1.bf16.msra.mxu0 %v479
    %615 = vmatprep.subr.bf16.mxu0 0
    %616 = vmatpush1.bf16.msra.mxu0 %v480
    %617 = vmatprep.subr.bf16.mxu0 0
    %618 = vmatpush1.bf16.msra.mxu0 %v481
    %619 = vmatprep.subr.bf16.mxu0 0
    %620 = vmatpush1.bf16.msra.mxu0 %v482
    %621 = vmatprep.subr.bf16.mxu0 0
    %622 = vmatpush1.bf16.msra.mxu0 %v483
    %623 = vmatprep.subr.bf16.mxu0 0
    %624 = vmatpush1.bf16.msra.mxu0 %v484
    %625 = vmatprep.subr.bf16.mxu0 0
    %626 = vmatpush1.bf16.msra.mxu0 %v485
    %627 = vmatprep.subr.bf16.mxu0 0
    %628 = vmatpush1.bf16.msra.mxu0 %v486
    %629 = vmatprep.subr.bf16.mxu0 0
    %630 = vmatpush1.bf16.msra.mxu0 %v487
    %631 = vmatprep.subr.bf16.mxu0 0
    %632 = vmatpush1.bf16.msra.mxu0 %v488
    %633 = vmatprep.mubr.bf16.mxu0 %v82
    %634 = vmatmul.mubr.bf16.gmra.mrb[0].mxu0 %v81
    %v635 = vpop.f32.mrb[0].mxu0
    %v636 = vadd.f32 0.0, %v635
    %v637 = vpop.f32.mrb[0].mxu0
    %v638 = vpop.f32.mrb[0].mxu0
    %v639 = vpop.f32.mrb[0].mxu0
    %640 = vdwg.mxu0
    %641 = vmatprep.subr.bf16.mxu0 0
    %642 = vmatpush1.bf16.msra.mxu0 %v489
    %643 = vmatprep.subr.bf16.mxu0 0
    %644 = vmatpush1.bf16.msra.mxu0 %v490
    %645 = vmatprep.subr.bf16.mxu0 0
    %646 = vmatpush1.bf16.msra.mxu0 %v491
    %647 = vmatprep.subr.bf16.mxu0 0
    %648 = vmatpush1.bf16.msra.mxu0 %v492
    %649 = vmatprep.subr.bf16.mxu0 0
    %650 = vmatpush1.bf16.msra.mxu0 %v493
    %651 = vmatprep.subr.bf16.mxu0 0
    %652 = vmatpush1.bf16.msra.mxu0 %v494
    %653 = vmatprep.subr.bf16.mxu0 0
    %654 = vmatpush1.bf16.msra.mxu0 %v495
    %655 = vmatprep.subr.bf16.mxu0 0
    %656 = vmatpush1.bf16.msra.mxu0 %v496
    %657 = vmatprep.subr.bf16.mxu0 0
    %658 = vmatpush1.bf16.msra.mxu0 %v497
    %659 = vmatprep.subr.bf16.mxu0 0
    %660 = vmatpush1.bf16.msra.mxu0 %v498
    %661 = vmatprep.subr.bf16.mxu0 0
    %662 = vmatpush1.bf16.msra.mxu0 %v499
    %663 = vmatprep.subr.bf16.mxu0 0
    %664 = vmatpush1.bf16.msra.mxu0 %v500
    %665 = vmatprep.subr.bf16.mxu0 0
    %666 = vmatpush1.bf16.msra.mxu0 %v501
    %667 = vmatprep.subr.bf16.mxu0 0
    %668 = vmatpush1.bf16.msra.mxu0 %v502
    %669 = vmatprep.subr.bf16.mxu0 0
    %670 = vmatpush1.bf16.msra.mxu0 %v503
    %671 = vmatprep.subr.bf16.mxu0 0
    %672 = vmatpush1.bf16.msra.mxu0 %v504
    %673 = vmatprep.mubr.bf16.mxu0 %v84
    %674 = vmatmul.mubr.bf16.gmra.mrb[0].mxu0 %v83
    %v675 = vpop.f32.mrb[0].mxu0
    %v676 = vadd.f32 %v636, %v675
    %v677 = vpop.f32.mrb[0].mxu0
    %v678 = vpop.f32.mrb[0].mxu0
    %v679 = vpop.f32.mrb[0].mxu0
    %680 = vdwg.mxu0
    %681 = vmatprep.subr.bf16.mxu0 0
    %682 = vmatpush1.bf16.msra.mxu0 %v505
    %683 = vmatprep.subr.bf16.mxu0 0
    %684 = vmatpush1.bf16.msra.mxu0 %v506
    %685 = vmatprep.subr.bf16.mxu0 0
    %686 = vmatpush1.bf16.msra.mxu0 %v507
    %687 = vmatprep.subr.bf16.mxu0 0
    %688 = vmatpush1.bf16.msra.mxu0 %v508
    %689 = vmatprep.subr.bf16.mxu0 0
    %690 = vmatpush1.bf16.msra.mxu0 %v509
    %691 = vmatprep.subr.bf16.mxu0 0
    %692 = vmatpush1.bf16.msra.mxu0 %v510
    %693 = vmatprep.subr.bf16.mxu0 0
    %694 = vmatpush1.bf16.msra.mxu0 %v511
    %695 = vmatprep.subr.bf16.mxu0 0
    %696 = vmatpush1.bf16.msra.mxu0 %v512
    %697 = vmatprep.subr.bf16.mxu0 0
    %698 = vmatpush1.bf16.msra.mxu0 %v513
    %699 = vmatprep.subr.bf16.mxu0 0
    %700 = vmatpush1.bf16.msra.mxu0 %v514
    %701 = vmatprep.subr.bf16.mxu0 0
    %702 = vmatpush1.bf16.msra.mxu0 %v515
    %703 = vmatprep.subr.bf16.mxu0 0
    %704 = vmatpush1.bf16.msra.mxu0 %v516
    %705 = vmatprep.subr.bf16.mxu0 0
    %706 = vmatpush1.bf16.msra.mxu0 %v517
    %707 = vmatprep.subr.bf16.mxu0 0
    %708 = vmatpush1.bf16.msra.mxu0 %v518
    %709 = vmatprep.subr.bf16.mxu0 0
    %710 = vmatpush1.bf16.msra.mxu0 %v519
    %711 = vmatprep.subr.bf16.mxu0 0
    %712 = vmatpush1.bf16.msra.mxu0 %v520
    %713 = vmatprep.mubr.bf16.mxu0 %v86
    %714 = vmatmul.mubr.bf16.gmra.mrb[0].mxu0 %v85
    %v715 = vpop.f32.mrb[0].mxu0
    %v716 = vadd.f32 %v676, %v715
    %v717 = vpop.f32.mrb[0].mxu0
    %v718 = vpop.f32.mrb[0].mxu0
    %v719 = vpop.f32.mrb[0].mxu0
    %720 = vdwg.mxu0
    %721 = vmatprep.subr.bf16.mxu0 0
    %722 = vmatpush1.bf16.msra.mxu0 %v521
    %723 = vmatprep.subr.bf16.mxu0 0
    %724 = vmatpush1.bf16.msra.mxu0 %v522
    %725 = vmatprep.subr.bf16.mxu0 0
    %726 = vmatpush1.bf16.msra.mxu0 %v523
    %727 = vmatprep.subr.bf16.mxu0 0
    %728 = vmatpush1.bf16.msra.mxu0 %v524
    %729 = vmatprep.subr.bf16.mxu0 0
    %730 = vmatpush1.bf16.msra.mxu0 %v525
    %731 = vmatprep.subr.bf16.mxu0 0
    %732 = vmatpush1.bf16.msra.mxu0 %v526
    %733 = vmatprep.subr.bf16.mxu0 0
    %734 = vmatpush1.bf16.msra.mxu0 %v527
    %735 = vmatprep.subr.bf16.mxu0 0
    %736 = vmatpush1.bf16.msra.mxu0 %v528
    %737 = vmatprep.subr.bf16.mxu0 0
    %738 = vmatpush1.bf16.msra.mxu0 %v529
    %739 = vmatprep.subr.bf16.mxu0 0
    %740 = vmatpush1.bf16.msra.mxu0 %v530
    %741 = vmatprep.subr.bf16.mxu0 0
    %742 = vmatpush1.bf16.msra.mxu0 %v531
    %743 = vmatprep.subr.bf16.mxu0 0
    %744 = vmatpush1.bf16.msra.mxu0 %v532
    %745 = vmatprep.subr.bf16.mxu0 0
    %746 = vmatpush1.bf16.msra.mxu0 %v533
    %747 = vmatprep.subr.bf16.mxu0 0
    %748 = vmatpush1.bf16.msra.mxu0 %v534
    %749 = vmatprep.subr.bf16.mxu0 0
    %750 = vmatpush1.bf16.msra.mxu0 %v535
    %751 = vmatprep.subr.bf16.mxu0 0
    %752 = vmatpush1.bf16.msra.mxu0 %v536
    %753 = vmatprep.mubr.bf16.mxu0 %v88
    %754 = vmatmul.mubr.bf16.gmra.mrb[0].mxu0 %v87
    %v755 = vpop.f32.mrb[0].mxu0
    %v756 = vadd.f32 %v716, %v755
    %v757 = vpop.f32.mrb[0].mxu0
    %v758 = vpop.f32.mrb[0].mxu0
    %v759 = vpop.f32.mrb[0].mxu0
    %760 = vdwg.mxu0
    %v761 = vpack.c.bf16 %v756, %v756
    %v762 = vld [vmem:[#allocation7] sm:$0xff]
    %v763 = vld [vmem:[#allocation7 + $0x8] sm:$0xff]
    %v764 = vld [vmem:[#allocation7 + $0x10] sm:$0xff]
    %v765 = vld [vmem:[#allocation7 + $0x18] sm:$0xff]
    %v766 = vld [vmem:[#allocation7 + $0x20] sm:$0xff]
    %v767 = vld [vmem:[#allocation7 + $0x28] sm:$0xff]
    %v768 = vld [vmem:[#allocation7 + $0x30] sm:$0xff]
    %v769 = vld [vmem:[#allocation7 + $0x38] sm:$0xff]
    %v770 = vld [vmem:[#allocation7 + $0x40] sm:$0xff]
    %v771 = vld [vmem:[#allocation7 + $0x48] sm:$0xff]
    %v772 = vld [vmem:[#allocation7 + $0x50] sm:$0xff]
    %v773 = vld [vmem:[#allocation7 + $0x58] sm:$0xff]
    %v774 = vld [vmem:[#allocation7 + $0x60] sm:$0xff]
    %v775 = vld [vmem:[#allocation7 + $0x68] sm:$0xff]
    %v776 = vld [vmem:[#allocation7 + $0x70] sm:$0xff]
    %v777 = vld [vmem:[#allocation7 + $0x78] sm:$0xff]
    %v778 = vld [vmem:[#allocation7 + $0x80] sm:$0xff]
    %v779 = vld [vmem:[#allocation7 + $0x88] sm:$0xff]
    %v780 = vld [vmem:[#allocation7 + $0x90] sm:$0xff]
    %v781 = vld [vmem:[#allocation7 + $0x98] sm:$0xff]
    %v782 = vld [vmem:[#allocation7 + $0xa0] sm:$0xff]
    %v783 = vld [vmem:[#allocation7 + $0xa8] sm:$0xff]
    %v784 = vld [vmem:[#allocation7 + $0xb0] sm:$0xff]
    %v785 = vld [vmem:[#allocation7 + $0xb8] sm:$0xff]
    %v786 = vld [vmem:[#allocation7 + $0xc0] sm:$0xff]
    %v787 = vld [vmem:[#allocation7 + $0xc8] sm:$0xff]
    %v788 = vld [vmem:[#allocation7 + $0xd0] sm:$0xff]
    %v789 = vld [vmem:[#allocation7 + $0xd8] sm:$0xff]
    %v790 = vld [vmem:[#allocation7 + $0xe0] sm:$0xff]
    %v791 = vld [vmem:[#allocation7 + $0xe8] sm:$0xff]
    %v792 = vld [vmem:[#allocation7 + $0xf0] sm:$0xff]
    %v793 = vld [vmem:[#allocation7 + $0xf8] sm:$0xff]
    %v794 = vld [vmem:[#allocation7 + $0x100] sm:$0xff]
    %v795 = vld [vmem:[#allocation7 + $0x108] sm:$0xff]
    %v796 = vld [vmem:[#allocation7 + $0x110] sm:$0xff]
    %v797 = vld [vmem:[#allocation7 + $0x118] sm:$0xff]
    %v798 = vld [vmem:[#allocation7 + $0x120] sm:$0xff]
    %v799 = vld [vmem:[#allocation7 + $0x128] sm:$0xff]
    %v800 = vld [vmem:[#allocation7 + $0x130] sm:$0xff]
    %v801 = vld [vmem:[#allocation7 + $0x138] sm:$0xff]
    %v802 = vld [vmem:[#allocation7 + $0x140] sm:$0xff]
    %v803 = vld [vmem:[#allocation7 + $0x148] sm:$0xff]
    %v804 = vld [vmem:[#allocation7 + $0x150] sm:$0xff]
    %v805 = vld [vmem:[#allocation7 + $0x158] sm:$0xff]
    %v806 = vld [vmem:[#allocation7 + $0x160] sm:$0xff]
    %v807 = vld [vmem:[#allocation7 + $0x168] sm:$0xff]
    %v808 = vld [vmem:[#allocation7 + $0x170] sm:$0xff]
    %v809 = vld [vmem:[#allocation7 + $0x178] sm:$0xff]
    %v810 = vld [vmem:[#allocation7 + $0x180] sm:$0xff]
    %v811 = vld [vmem:[#allocation7 + $0x188] sm:$0xff]
    %v812 = vld [vmem:[#allocation7 + $0x190] sm:$0xff]
    %v813 = vld [vmem:[#allocation7 + $0x198] sm:$0xff]
    %v814 = vld [vmem:[#allocation7 + $0x1a0] sm:$0xff]
    %v815 = vld [vmem:[#allocation7 + $0x1a8] sm:$0xff]
    %v816 = vld [vmem:[#allocation7 + $0x1b0] sm:$0xff]
    %v817 = vld [vmem:[#allocation7 + $0x1b8] sm:$0xff]
    %v818 = vld [vmem:[#allocation7 + $0x1c0] sm:$0xff]
    %v819 = vld [vmem:[#allocation7 + $0x1c8] sm:$0xff]
    %v820 = vld [vmem:[#allocation7 + $0x1d0] sm:$0xff]
    %v821 = vld [vmem:[#allocation7 + $0x1d8] sm:$0xff]
    %v822 = vld [vmem:[#allocation7 + $0x1e0] sm:$0xff]
    %v823 = vld [vmem:[#allocation7 + $0x1e8] sm:$0xff]
    %v824 = vld [vmem:[#allocation7 + $0x1f0] sm:$0xff]
    %v825 = vld [vmem:[#allocation7 + $0x1f8] sm:$0xff]
    %v826 = vld [vmem:[#allocation7 + $0x200] sm:$0xff]
    %v827 = vld [vmem:[#allocation7 + $0x208] sm:$0xff]
    %v828 = vld [vmem:[#allocation7 + $0x210] sm:$0xff]
    %v829 = vld [vmem:[#allocation7 + $0x218] sm:$0xff]
    %v830 = vld [vmem:[#allocation7 + $0x220] sm:$0xff]
    %v831 = vld [vmem:[#allocation7 + $0x228] sm:$0xff]
    %v832 = vld [vmem:[#allocation7 + $0x230] sm:$0xff]
    %v833 = vld [vmem:[#allocation7 + $0x238] sm:$0xff]
    %v834 = vld [vmem:[#allocation7 + $0x240] sm:$0xff]
    %v835 = vld [vmem:[#allocation7 + $0x248] sm:$0xff]
    %v836 = vld [vmem:[#allocation7 + $0x250] sm:$0xff]
    %v837 = vld [vmem:[#allocation7 + $0x258] sm:$0xff]
    %v838 = vld [vmem:[#allocation7 + $0x260] sm:$0xff]
    %v839 = vld [vmem:[#allocation7 + $0x268] sm:$0xff]
    %v840 = vld [vmem:[#allocation7 + $0x270] sm:$0xff]
    %v841 = vld [vmem:[#allocation7 + $0x278] sm:$0xff]
    %v842 = vld [vmem:[#allocation7 + $0x280] sm:$0xff]
    %v843 = vld [vmem:[#allocation7 + $0x288] sm:$0xff]
    %v844 = vld [vmem:[#allocation7 + $0x290] sm:$0xff]
    %v845 = vld [vmem:[#allocation7 + $0x298] sm:$0xff]
    %v846 = vld [vmem:[#allocation7 + $0x2a0] sm:$0xff]
    %v847 = vld [vmem:[#allocation7 + $0x2a8] sm:$0xff]
    %v848 = vld [vmem:[#allocation7 + $0x2b0] sm:$0xff]
    %v849 = vld [vmem:[#allocation7 + $0x2b8] sm:$0xff]
    %v850 = vld [vmem:[#allocation7 + $0x2c0] sm:$0xff]
    %v851 = vld [vmem:[#allocation7 + $0x2c8] sm:$0xff]
    %v852 = vld [vmem:[#allocation7 + $0x2d0] sm:$0xff]
    %v853 = vld [vmem:[#allocation7 + $0x2d8] sm:$0xff]
    %v854 = vld [vmem:[#allocation7 + $0x2e0] sm:$0xff]
    %v855 = vld [vmem:[#allocation7 + $0x2e8] sm:$0xff]
    %v856 = vld [vmem:[#allocation7 + $0x2f0] sm:$0xff]
    %v857 = vld [vmem:[#allocation7 + $0x2f8] sm:$0xff]
    %v858 = vld [vmem:[#allocation7 + $0x300] sm:$0xff]
    %v859 = vld [vmem:[#allocation7 + $0x308] sm:$0xff]
    %v860 = vld [vmem:[#allocation7 + $0x310] sm:$0xff]
    %v861 = vld [vmem:[#allocation7 + $0x318] sm:$0xff]
    %v862 = vld [vmem:[#allocation7 + $0x320] sm:$0xff]
    %v863 = vld [vmem:[#allocation7 + $0x328] sm:$0xff]
    %v864 = vld [vmem:[#allocation7 + $0x330] sm:$0xff]
    %v865 = vld [vmem:[#allocation7 + $0x338] sm:$0xff]
    %v866 = vld [vmem:[#allocation7 + $0x340] sm:$0xff]
    %v867 = vld [vmem:[#allocation7 + $0x348] sm:$0xff]
    %v868 = vld [vmem:[#allocation7 + $0x350] sm:$0xff]
    %v869 = vld [vmem:[#allocation7 + $0x358] sm:$0xff]
    %v870 = vld [vmem:[#allocation7 + $0x360] sm:$0xff]
    %v871 = vld [vmem:[#allocation7 + $0x368] sm:$0xff]
    %v872 = vld [vmem:[#allocation7 + $0x370] sm:$0xff]
    %v873 = vld [vmem:[#allocation7 + $0x378] sm:$0xff]
    %v874 = vld [vmem:[#allocation7 + $0x380] sm:$0xff]
    %v875 = vld [vmem:[#allocation7 + $0x388] sm:$0xff]
    %v876 = vld [vmem:[#allocation7 + $0x390] sm:$0xff]
    %v877 = vld [vmem:[#allocation7 + $0x398] sm:$0xff]
    %v878 = vld [vmem:[#allocation7 + $0x3a0] sm:$0xff]
    %v879 = vld [vmem:[#allocation7 + $0x3a8] sm:$0xff]
    %v880 = vld [vmem:[#allocation7 + $0x3b0] sm:$0xff]
    %v881 = vld [vmem:[#allocation7 + $0x3b8] sm:$0xff]
    %v882 = vld [vmem:[#allocation7 + $0x3c0] sm:$0xff]
    %v883 = vld [vmem:[#allocation7 + $0x3c8] sm:$0xff]
    %v884 = vld [vmem:[#allocation7 + $0x3d0] sm:$0xff]
    %v885 = vld [vmem:[#allocation7 + $0x3d8] sm:$0xff]
    %v886 = vld [vmem:[#allocation7 + $0x3e0] sm:$0xff]
    %v887 = vld [vmem:[#allocation7 + $0x3e8] sm:$0xff]
    %v888 = vld [vmem:[#allocation7 + $0x3f0] sm:$0xff]
    %v889 = vld [vmem:[#allocation7 + $0x3f8] sm:$0xff]
    %v1018 = vunpack.c.l.b16 %v762
    %v1019 = vunpack.c.h.b16 %v762
    %v1020 = vunpack.c.l.b16 %v763
    %v1021 = vunpack.c.h.b16 %v763
    %v1022 = vunpack.c.l.b16 %v764
    %v1023 = vunpack.c.h.b16 %v764
    %v1024 = vunpack.c.l.b16 %v765
    %v1025 = vunpack.c.h.b16 %v765
    %v1026 = vunpack.c.l.b16 %v766
    %v1027 = vunpack.c.h.b16 %v766
    %v1028 = vunpack.c.l.b16 %v767
    %v1029 = vunpack.c.h.b16 %v767
    %v1030 = vunpack.c.l.b16 %v768
    %v1031 = vunpack.c.h.b16 %v768
    %v1032 = vunpack.c.l.b16 %v769
    %v1033 = vunpack.c.h.b16 %v769
    %v1034 = vunpack.c.l.b16 %v770
    %v1035 = vunpack.c.h.b16 %v770
    %v1036 = vunpack.c.l.b16 %v771
    %v1037 = vunpack.c.h.b16 %v771
    %v1038 = vunpack.c.l.b16 %v772
    %v1039 = vunpack.c.h.b16 %v772
    %v1040 = vunpack.c.l.b16 %v773
    %v1041 = vunpack.c.h.b16 %v773
    %v1042 = vunpack.c.l.b16 %v774
    %v1043 = vunpack.c.h.b16 %v774
    %v1044 = vunpack.c.l.b16 %v775
    %v1045 = vunpack.c.h.b16 %v775
    %v1046 = vunpack.c.l.b16 %v776
    %v1047 = vunpack.c.h.b16 %v776
    %v1048 = vunpack.c.l.b16 %v777
    %v1049 = vunpack.c.h.b16 %v777
    %v1050 = vunpack.c.l.b16 %v778
    %v1051 = vunpack.c.h.b16 %v778
    %v1052 = vunpack.c.l.b16 %v779
    %v1053 = vunpack.c.h.b16 %v779
    %v1054 = vunpack.c.l.b16 %v780
    %v1055 = vunpack.c.h.b16 %v780
    %v1056 = vunpack.c.l.b16 %v781
    %v1057 = vunpack.c.h.b16 %v781
    %v1058 = vunpack.c.l.b16 %v782
    %v1059 = vunpack.c.h.b16 %v782
    %v1060 = vunpack.c.l.b16 %v783
    %v1061 = vunpack.c.h.b16 %v783
    %v1062 = vunpack.c.l.b16 %v784
    %v1063 = vunpack.c.h.b16 %v784
    %v1064 = vunpack.c.l.b16 %v785
    %v1065 = vunpack.c.h.b16 %v785
    %v1066 = vunpack.c.l.b16 %v786
    %v1067 = vunpack.c.h.b16 %v786
    %v1068 = vunpack.c.l.b16 %v787
    %v1069 = vunpack.c.h.b16 %v787
    %v1070 = vunpack.c.l.b16 %v788
    %v1071 = vunpack.c.h.b16 %v788
    %v1072 = vunpack.c.l.b16 %v789
    %v1073 = vunpack.c.h.b16 %v789
    %v1074 = vunpack.c.l.b16 %v790
    %v1075 = vunpack.c.h.b16 %v790
    %v1076 = vunpack.c.l.b16 %v791
    %v1077 = vunpack.c.h.b16 %v791
    %v1078 = vunpack.c.l.b16 %v792
    %v1079 = vunpack.c.h.b16 %v792
    %v1080 = vunpack.c.l.b16 %v793
    %v1081 = vunpack.c.h.b16 %v793
    %v1082 = vunpack.c.l.b16 %v794
    %v1083 = vunpack.c.h.b16 %v794
    %v1084 = vunpack.c.l.b16 %v795
    %v1085 = vunpack.c.h.b16 %v795
    %v1086 = vunpack.c.l.b16 %v796
    %v1087 = vunpack.c.h.b16 %v796
    %v1088 = vunpack.c.l.b16 %v797
    %v1089 = vunpack.c.h.b16 %v797
    %v1090 = vunpack.c.l.b16 %v798
    %v1091 = vunpack.c.h.b16 %v798
    %v1092 = vunpack.c.l.b16 %v799
    %v1093 = vunpack.c.h.b16 %v799
    %v1094 = vunpack.c.l.b16 %v800
    %v1095 = vunpack.c.h.b16 %v800
    %v1096 = vunpack.c.l.b16 %v801
    %v1097 = vunpack.c.h.b16 %v801
    %v1098 = vunpack.c.l.b16 %v802
    %v1099 = vunpack.c.h.b16 %v802
    %v1100 = vunpack.c.l.b16 %v803
    %v1101 = vunpack.c.h.b16 %v803
    %v1102 = vunpack.c.l.b16 %v804
    %v1103 = vunpack.c.h.b16 %v804
    %v1104 = vunpack.c.l.b16 %v805
    %v1105 = vunpack.c.h.b16 %v805
    %v1106 = vunpack.c.l.b16 %v806
    %v1107 = vunpack.c.h.b16 %v806
    %v1108 = vunpack.c.l.b16 %v807
    %v1109 = vunpack.c.h.b16 %v807
    %v1110 = vunpack.c.l.b16 %v808
    %v1111 = vunpack.c.h.b16 %v808
    %v1112 = vunpack.c.l.b16 %v809
    %v1113 = vunpack.c.h.b16 %v809
    %v1114 = vunpack.c.l.b16 %v810
    %v1115 = vunpack.c.h.b16 %v810
    %v1116 = vunpack.c.l.b16 %v811
    %v1117 = vunpack.c.h.b16 %v811
    %v1118 = vunpack.c.l.b16 %v812
    %v1119 = vunpack.c.h.b16 %v812
    %v1120 = vunpack.c.l.b16 %v813
    %v1121 = vunpack.c.h.b16 %v813
    %v1122 = vunpack.c.l.b16 %v814
    %v1123 = vunpack.c.h.b16 %v814
    %v1124 = vunpack.c.l.b16 %v815
    %v1125 = vunpack.c.h.b16 %v815
    %v1126 = vunpack.c.l.b16 %v816
    %v1127 = vunpack.c.h.b16 %v816
    %v1128 = vunpack.c.l.b16 %v817
    %v1129 = vunpack.c.h.b16 %v817
    %v1130 = vunpack.c.l.b16 %v818
    %v1131 = vunpack.c.h.b16 %v818
    %v1132 = vunpack.c.l.b16 %v819
    %v1133 = vunpack.c.h.b16 %v819
    %v1134 = vunpack.c.l.b16 %v820
    %v1135 = vunpack.c.h.b16 %v820
    %v1136 = vunpack.c.l.b16 %v821
    %v1137 = vunpack.c.h.b16 %v821
    %v1138 = vunpack.c.l.b16 %v822
    %v1139 = vunpack.c.h.b16 %v822
    %v1140 = vunpack.c.l.b16 %v823
    %v1141 = vunpack.c.h.b16 %v823
    %v1142 = vunpack.c.l.b16 %v824
    %v1143 = vunpack.c.h.b16 %v824
    %v1144 = vunpack.c.l.b16 %v825
    %v1145 = vunpack.c.h.b16 %v825
    %v1146 = vunpack.c.l.b16 %v826
    %v1147 = vunpack.c.h.b16 %v826
    %v1148 = vunpack.c.l.b16 %v827
    %v1149 = vunpack.c.h.b16 %v827
    %v1150 = vunpack.c.l.b16 %v828
    %v1151 = vunpack.c.h.b16 %v828
    %v1152 = vunpack.c.l.b16 %v829
    %v1153 = vunpack.c.h.b16 %v829
    %v1154 = vunpack.c.l.b16 %v830
    %v1155 = vunpack.c.h.b16 %v830
    %v1156 = vunpack.c.l.b16 %v831
    %v1157 = vunpack.c.h.b16 %v831
    %v1158 = vunpack.c.l.b16 %v832
    %v1159 = vunpack.c.h.b16 %v832
    %v1160 = vunpack.c.l.b16 %v833
    %v1161 = vunpack.c.h.b16 %v833
    %v1162 = vunpack.c.l.b16 %v834
    %v1163 = vunpack.c.h.b16 %v834
    %v1164 = vunpack.c.l.b16 %v835
    %v1165 = vunpack.c.h.b16 %v835
    %v1166 = vunpack.c.l.b16 %v836
    %v1167 = vunpack.c.h.b16 %v836
    %v1168 = vunpack.c.l.b16 %v837
    %v1169 = vunpack.c.h.b16 %v837
    %v1170 = vunpack.c.l.b16 %v838
    %v1171 = vunpack.c.h.b16 %v838
    %v1172 = vunpack.c.l.b16 %v839
    %v1173 = vunpack.c.h.b16 %v839
    %v1174 = vunpack.c.l.b16 %v840
    %v1175 = vunpack.c.h.b16 %v840
    %v1176 = vunpack.c.l.b16 %v841
    %v1177 = vunpack.c.h.b16 %v841
    %v1178 = vunpack.c.l.b16 %v842
    %v1179 = vunpack.c.h.b16 %v842
    %v1180 = vunpack.c.l.b16 %v843
    %v1181 = vunpack.c.h.b16 %v843
    %v1182 = vunpack.c.l.b16 %v844
    %v1183 = vunpack.c.h.b16 %v844
    %v1184 = vunpack.c.l.b16 %v845
    %v1185 = vunpack.c.h.b16 %v845
    %v1186 = vunpack.c.l.b16 %v846
    %v1187 = vunpack.c.h.b16 %v846
    %v1188 = vunpack.c.l.b16 %v847
    %v1189 = vunpack.c.h.b16 %v847
    %v1190 = vunpack.c.l.b16 %v848
    %v1191 = vunpack.c.h.b16 %v848
    %v1192 = vunpack.c.l.b16 %v849
    %v1193 = vunpack.c.h.b16 %v849
    %v1194 = vunpack.c.l.b16 %v850
    %v1195 = vunpack.c.h.b16 %v850
    %v1196 = vunpack.c.l.b16 %v851
    %v1197 = vunpack.c.h.b16 %v851
    %v1198 = vunpack.c.l.b16 %v852
    %v1199 = vunpack.c.h.b16 %v852
    %v1200 = vunpack.c.l.b16 %v853
    %v1201 = vunpack.c.h.b16 %v853
    %v1202 = vunpack.c.l.b16 %v854
    %v1203 = vunpack.c.h.b16 %v854
    %v1204 = vunpack.c.l.b16 %v855
    %v1205 = vunpack.c.h.b16 %v855
    %v1206 = vunpack.c.l.b16 %v856
    %v1207 = vunpack.c.h.b16 %v856
    %v1208 = vunpack.c.l.b16 %v857
    %v1209 = vunpack.c.h.b16 %v857
    %v1210 = vunpack.c.l.b16 %v858
    %v1211 = vunpack.c.h.b16 %v858
    %v1212 = vunpack.c.l.b16 %v859
    %v1213 = vunpack.c.h.b16 %v859
    %v1214 = vunpack.c.l.b16 %v860
    %v1215 = vunpack.c.h.b16 %v860
    %v1216 = vunpack.c.l.b16 %v861
    %v1217 = vunpack.c.h.b16 %v861
    %v1218 = vunpack.c.l.b16 %v862
    %v1219 = vunpack.c.h.b16 %v862
    %v1220 = vunpack.c.l.b16 %v863
    %v1221 = vunpack.c.h.b16 %v863
    %v1222 = vunpack.c.l.b16 %v864
    %v1223 = vunpack.c.h.b16 %v864
    %v1224 = vunpack.c.l.b16 %v865
    %v1225 = vunpack.c.h.b16 %v865
    %v1226 = vunpack.c.l.b16 %v866
    %v1227 = vunpack.c.h.b16 %v866
    %v1228 = vunpack.c.l.b16 %v867
    %v1229 = vunpack.c.h.b16 %v867
    %v1230 = vunpack.c.l.b16 %v868
    %v1231 = vunpack.c.h.b16 %v868
    %v1232 = vunpack.c.l.b16 %v869
    %v1233 = vunpack.c.h.b16 %v869
    %v1234 = vunpack.c.l.b16 %v870
    %v1235 = vunpack.c.h.b16 %v870
    %v1236 = vunpack.c.l.b16 %v871
    %v1237 = vunpack.c.h.b16 %v871
    %v1238 = vunpack.c.l.b16 %v872
    %v1239 = vunpack.c.h.b16 %v872
    %v1240 = vunpack.c.l.b16 %v873
    %v1241 = vunpack.c.h.b16 %v873
    %v1242 = vunpack.c.l.b16 %v874
    %v1243 = vunpack.c.h.b16 %v874
    %v1244 = vunpack.c.l.b16 %v875
    %v1245 = vunpack.c.h.b16 %v875
    %v1246 = vunpack.c.l.b16 %v876
    %v1247 = vunpack.c.h.b16 %v876
    %v1248 = vunpack.c.l.b16 %v877
    %v1249 = vunpack.c.h.b16 %v877
    %v1250 = vunpack.c.l.b16 %v878
    %v1251 = vunpack.c.h.b16 %v878
    %v1252 = vunpack.c.l.b16 %v879
    %v1253 = vunpack.c.h.b16 %v879
    %v1254 = vunpack.c.l.b16 %v880
    %v1255 = vunpack.c.h.b16 %v880
    %v1256 = vunpack.c.l.b16 %v881
    %v1257 = vunpack.c.h.b16 %v881
    %v1258 = vunpack.c.l.b16 %v882
    %v1259 = vunpack.c.h.b16 %v882
    %v1260 = vunpack.c.l.b16 %v883
    %v1261 = vunpack.c.h.b16 %v883
    %v1262 = vunpack.c.l.b16 %v884
    %v1263 = vunpack.c.h.b16 %v884
    %v1264 = vunpack.c.l.b16 %v885
    %v1265 = vunpack.c.h.b16 %v885
    %v1266 = vunpack.c.l.b16 %v886
    %v1267 = vunpack.c.h.b16 %v886
    %v1268 = vunpack.c.l.b16 %v887
    %v1269 = vunpack.c.h.b16 %v887
    %v1270 = vunpack.c.l.b16 %v888
    %v1271 = vunpack.c.h.b16 %v888
    %v1272 = vunpack.c.l.b16 %v889
    %v1273 = vunpack.c.h.b16 %v889
    %v1274 = vpack.c.b16 %v1034, %v1018
    %v1275 = vpack.c.b16 %v1035, %v1019
    %v1276 = vpack.c.b16 %v1036, %v1020
    %v1277 = vpack.c.b16 %v1037, %v1021
    %v1278 = vpack.c.b16 %v1038, %v1022
    %v1279 = vpack.c.b16 %v1039, %v1023
    %v1280 = vpack.c.b16 %v1040, %v1024
    %v1281 = vpack.c.b16 %v1041, %v1025
    %v1282 = vpack.c.b16 %v1042, %v1026
    %v1283 = vpack.c.b16 %v1043, %v1027
    %v1284 = vpack.c.b16 %v1044, %v1028
    %v1285 = vpack.c.b16 %v1045, %v1029
    %v1286 = vpack.c.b16 %v1046, %v1030
    %v1287 = vpack.c.b16 %v1047, %v1031
    %v1288 = vpack.c.b16 %v1048, %v1032
    %v1289 = vpack.c.b16 %v1049, %v1033
    %v1290 = vpack.c.b16 %v1066, %v1050
    %v1291 = vpack.c.b16 %v1067, %v1051
    %v1292 = vpack.c.b16 %v1068, %v1052
    %v1293 = vpack.c.b16 %v1069, %v1053
    %v1294 = vpack.c.b16 %v1070, %v1054
    %v1295 = vpack.c.b16 %v1071, %v1055
    %v1296 = vpack.c.b16 %v1072, %v1056
    %v1297 = vpack.c.b16 %v1073, %v1057
    %v1298 = vpack.c.b16 %v1074, %v1058
    %v1299 = vpack.c.b16 %v1075, %v1059
    %v1300 = vpack.c.b16 %v1076, %v1060
    %v1301 = vpack.c.b16 %v1077, %v1061
    %v1302 = vpack.c.b16 %v1078, %v1062
    %v1303 = vpack.c.b16 %v1079, %v1063
    %v1304 = vpack.c.b16 %v1080, %v1064
    %v1305 = vpack.c.b16 %v1081, %v1065
    %v1306 = vpack.c.b16 %v1098, %v1082
    %v1307 = vpack.c.b16 %v1099, %v1083
    %v1308 = vpack.c.b16 %v1100, %v1084
    %v1309 = vpack.c.b16 %v1101, %v1085
    %v1310 = vpack.c.b16 %v1102, %v1086
    %v1311 = vpack.c.b16 %v1103, %v1087
    %v1312 = vpack.c.b16 %v1104, %v1088
    %v1313 = vpack.c.b16 %v1105, %v1089
    %v1314 = vpack.c.b16 %v1106, %v1090
    %v1315 = vpack.c.b16 %v1107, %v1091
    %v1316 = vpack.c.b16 %v1108, %v1092
    %v1317 = vpack.c.b16 %v1109, %v1093
    %v1318 = vpack.c.b16 %v1110, %v1094
    %v1319 = vpack.c.b16 %v1111, %v1095
    %v1320 = vpack.c.b16 %v1112, %v1096
    %v1321 = vpack.c.b16 %v1113, %v1097
    %v1322 = vpack.c.b16 %v1130, %v1114
    %v1323 = vpack.c.b16 %v1131, %v1115
    %v1324 = vpack.c.b16 %v1132, %v1116
    %v1325 = vpack.c.b16 %v1133, %v1117
    %v1326 = vpack.c.b16 %v1134, %v1118
    %v1327 = vpack.c.b16 %v1135, %v1119
    %v1328 = vpack.c.b16 %v1136, %v1120
    %v1329 = vpack.c.b16 %v1137, %v1121
    %v1330 = vpack.c.b16 %v1138, %v1122
    %v1331 = vpack.c.b16 %v1139, %v1123
    %v1332 = vpack.c.b16 %v1140, %v1124
    %v1333 = vpack.c.b16 %v1141, %v1125
    %v1334 = vpack.c.b16 %v1142, %v1126
    %v1335 = vpack.c.b16 %v1143, %v1127
    %v1336 = vpack.c.b16 %v1144, %v1128
    %v1337 = vpack.c.b16 %v1145, %v1129
    %v1338 = vpack.c.b16 %v1162, %v1146
    %v1339 = vpack.c.b16 %v1163, %v1147
    %v1340 = vpack.c.b16 %v1164, %v1148
    %v1341 = vpack.c.b16 %v1165, %v1149
    %v1342 = vpack.c.b16 %v1166, %v1150
    %v1343 = vpack.c.b16 %v1167, %v1151
    %v1344 = vpack.c.b16 %v1168, %v1152
    %v1345 = vpack.c.b16 %v1169, %v1153
    %v1346 = vpack.c.b16 %v1170, %v1154
    %v1347 = vpack.c.b16 %v1171, %v1155
    %v1348 = vpack.c.b16 %v1172, %v1156
    %v1349 = vpack.c.b16 %v1173, %v1157
    %v1350 = vpack.c.b16 %v1174, %v1158
    %v1351 = vpack.c.b16 %v1175, %v1159
    %v1352 = vpack.c.b16 %v1176, %v1160
    %v1353 = vpack.c.b16 %v1177, %v1161
    %v1354 = vpack.c.b16 %v1194, %v1178
    %v1355 = vpack.c.b16 %v1195, %v1179
    %v1356 = vpack.c.b16 %v1196, %v1180
    %v1357 = vpack.c.b16 %v1197, %v1181
    %v1358 = vpack.c.b16 %v1198, %v1182
    %v1359 = vpack.c.b16 %v1199, %v1183
    %v1360 = vpack.c.b16 %v1200, %v1184
    %v1361 = vpack.c.b16 %v1201, %v1185
    %v1362 = vpack.c.b16 %v1202, %v1186
    %v1363 = vpack.c.b16 %v1203, %v1187
    %v1364 = vpack.c.b16 %v1204, %v1188
    %v1365 = vpack.c.b16 %v1205, %v1189
    %v1366 = vpack.c.b16 %v1206, %v1190
    %v1367 = vpack.c.b16 %v1207, %v1191
    %v1368 = vpack.c.b16 %v1208, %v1192
    %v1369 = vpack.c.b16 %v1209, %v1193
    %v1370 = vpack.c.b16 %v1226, %v1210
    %v1371 = vpack.c.b16 %v1227, %v1211
    %v1372 = vpack.c.b16 %v1228, %v1212
    %v1373 = vpack.c.b16 %v1229, %v1213
    %v1374 = vpack.c.b16 %v1230, %v1214
    %v1375 = vpack.c.b16 %v1231, %v1215
    %v1376 = vpack.c.b16 %v1232, %v1216
    %v1377 = vpack.c.b16 %v1233, %v1217
    %v1378 = vpack.c.b16 %v1234, %v1218
    %v1379 = vpack.c.b16 %v1235, %v1219
    %v1380 = vpack.c.b16 %v1236, %v1220
    %v1381 = vpack.c.b16 %v1237, %v1221
    %v1382 = vpack.c.b16 %v1238, %v1222
    %v1383 = vpack.c.b16 %v1239, %v1223
    %v1384 = vpack.c.b16 %v1240, %v1224
    %v1385 = vpack.c.b16 %v1241, %v1225
    %v1386 = vpack.c.b16 %v1258, %v1242
    %v1387 = vpack.c.b16 %v1259, %v1243
    %v1388 = vpack.c.b16 %v1260, %v1244
    %v1389 = vpack.c.b16 %v1261, %v1245
    %v1390 = vpack.c.b16 %v1262, %v1246
    %v1391 = vpack.c.b16 %v1263, %v1247
    %v1392 = vpack.c.b16 %v1264, %v1248
    %v1393 = vpack.c.b16 %v1265, %v1249
    %v1394 = vpack.c.b16 %v1266, %v1250
    %v1395 = vpack.c.b16 %v1267, %v1251
    %v1396 = vpack.c.b16 %v1268, %v1252
    %v1397 = vpack.c.b16 %v1269, %v1253
    %v1398 = vpack.c.b16 %v1270, %v1254
    %v1399 = vpack.c.b16 %v1271, %v1255
    %v1400 = vpack.c.b16 %v1272, %v1256
    %v1401 = vpack.c.b16 %v1273, %v1257
    %1530 = vmatprep.subr.bf16.mxu0 %v1275
    %1531 = vmatpush1.bf16.msra.mxu0 %v1274
    %1532 = vmatprep.subr.bf16.mxu0 %v1291
    %1533 = vmatpush1.bf16.msra.mxu0 %v1290
    %1534 = vmatprep.subr.bf16.mxu0 %v1307
    %1535 = vmatpush1.bf16.msra.mxu0 %v1306
    %1536 = vmatprep.subr.bf16.mxu0 %v1323
    %1537 = vmatpush1.bf16.msra.mxu0 %v1322
    %1538 = vmatprep.subr.bf16.mxu0 %v1339
    %1539 = vmatpush1.bf16.msra.mxu0 %v1338
    %1540 = vmatprep.subr.bf16.mxu0 %v1355
    %1541 = vmatpush1.bf16.msra.mxu0 %v1354
    %1542 = vmatprep.subr.bf16.mxu0 %v1371
    %1543 = vmatpush1.bf16.msra.mxu0 %v1370
    %1544 = vmatprep.subr.bf16.mxu0 %v1387
    %1545 = vmatpush1.bf16.msra.mxu0 %v1386
    %1546 = vmatprep.subr.bf16.mxu0 0
    %1547 = vmatpush1.bf16.msra.mxu0 0
    %1548 = vmatprep.subr.bf16.mxu0 0
    %1549 = vmatpush1.bf16.msra.mxu0 0
    %1550 = vmatprep.subr.bf16.mxu0 0
    %1551 = vmatpush1.bf16.msra.mxu0 0
    %1552 = vmatprep.subr.bf16.mxu0 0
    %1553 = vmatpush1.bf16.msra.mxu0 0
    %1554 = vmatprep.subr.bf16.mxu0 0
    %1555 = vmatpush1.bf16.msra.mxu0 0
    %1556 = vmatprep.subr.bf16.mxu0 0
    %1557 = vmatpush1.bf16.msra.mxu0 0
    %1558 = vmatprep.subr.bf16.mxu0 0
    %1559 = vmatpush1.bf16.msra.mxu0 0
    %1560 = vmatprep.subr.bf16.mxu0 0
    %1561 = vmatpush1.bf16.msra.mxu0 0
    %1562 = vmatprep.mubr.bf16.mxu0 0
    %1563 = vmatmul.mubr.bf16.gmra.mrb[0].mxu0 %v761
    %v1564 = vpop.f32.mrb[0].mxu0
    %v1565 = vadd.f32 0.0, %v1564
    %v1566 = vpop.f32.mrb[0].mxu0
    %v1567 = vadd.f32 0.0, %v1566
    %v1568 = vpop.f32.mrb[0].mxu0
    %v1569 = vpop.f32.mrb[0].mxu0
    %1570 = vdwg.mxu0
    %1571 = vmatprep.subr.bf16.mxu0 %v1277
    %1572 = vmatpush1.bf16.msra.mxu0 %v1276
    %1573 = vmatprep.subr.bf16.mxu0 %v1293
    %1574 = vmatpush1.bf16.msra.mxu0 %v1292
    %1575 = vmatprep.subr.bf16.mxu0 %v1309
    %1576 = vmatpush1.bf16.msra.mxu0 %v1308
    %1577 = vmatprep.subr.bf16.mxu0 %v1325
    %1578 = vmatpush1.bf16.msra.mxu0 %v1324
    %1579 = vmatprep.subr.bf16.mxu0 %v1341
    %1580 = vmatpush1.bf16.msra.mxu0 %v1340
    %1581 = vmatprep.subr.bf16.mxu0 %v1357
    %1582 = vmatpush1.bf16.msra.mxu0 %v1356
    %1583 = vmatprep.subr.bf16.mxu0 %v1373
    %1584 = vmatpush1.bf16.msra.mxu0 %v1372
    %1585 = vmatprep.subr.bf16.mxu0 %v1389
    %1586 = vmatpush1.bf16.msra.mxu0 %v1388
    %1587 = vmatprep.subr.bf16.mxu0 0
    %1588 = vmatpush1.bf16.msra.mxu0 0
    %1589 = vmatprep.subr.bf16.mxu0 0
    %1590 = vmatpush1.bf16.msra.mxu0 0
    %1591 = vmatprep.subr.bf16.mxu0 0
    %1592 = vmatpush1.bf16.msra.mxu0 0
    %1593 = vmatprep.subr.bf16.mxu0 0
    %1594 = vmatpush1.bf16.msra.mxu0 0
    %1595 = vmatprep.subr.bf16.mxu0 0
    %1596 = vmatpush1.bf16.msra.mxu0 0
    %1597 = vmatprep.subr.bf16.mxu0 0
    %1598 = vmatpush1.bf16.msra.mxu0 0
    %1599 = vmatprep.subr.bf16.mxu0 0
    %1600 = vmatpush1.bf16.msra.mxu0 0
    %1601 = vmatprep.subr.bf16.mxu0 0
    %1602 = vmatpush1.bf16.msra.mxu0 0
    %1603 = vmatprep.mubr.bf16.mxu0 0
    %1604 = vmatmul.mubr.bf16.gmra.mrb[0].mxu0 %v761
    %v1605 = vpop.f32.mrb[0].mxu0
    %v1606 = vadd.f32 0.0, %v1605
    %v1607 = vpop.f32.mrb[0].mxu0
    %v1608 = vadd.f32 0.0, %v1607
    %v1609 = vpop.f32.mrb[0].mxu0
    %v1610 = vpop.f32.mrb[0].mxu0
    %1611 = vdwg.mxu0
    %1612 = vmatprep.subr.bf16.mxu0 %v1279
    %1613 = vmatpush1.bf16.msra.mxu0 %v1278
    %1614 = vmatprep.subr.bf16.mxu0 %v1295
    %1615 = vmatpush1.bf16.msra.mxu0 %v1294
    %1616 = vmatprep.subr.bf16.mxu0 %v1311
    %1617 = vmatpush1.bf16.msra.mxu0 %v1310
    %1618 = vmatprep.subr.bf16.mxu0 %v1327
    %1619 = vmatpush1.bf16.msra.mxu0 %v1326
    %1620 = vmatprep.subr.bf16.mxu0 %v1343
    %1621 = vmatpush1.bf16.msra.mxu0 %v1342
    %1622 = vmatprep.subr.bf16.mxu0 %v1359
    %1623 = vmatpush1.bf16.msra.mxu0 %v1358
    %1624 = vmatprep.subr.bf16.mxu0 %v1375
    %1625 = vmatpush1.bf16.msra.mxu0 %v1374
    %1626 = vmatprep.subr.bf16.mxu0 %v1391
    %1627 = vmatpush1.bf16.msra.mxu0 %v1390
    %1628 = vmatprep.subr.bf16.mxu0 0
    %1629 = vmatpush1.bf16.msra.mxu0 0
    %1630 = vmatprep.subr.bf16.mxu0 0
    %1631 = vmatpush1.bf16.msra.mxu0 0
    %1632 = vmatprep.subr.bf16.mxu0 0
    %1633 = vmatpush1.bf16.msra.mxu0 0
    %1634 = vmatprep.subr.bf16.mxu0 0
    %1635 = vmatpush1.bf16.msra.mxu0 0
    %1636 = vmatprep.subr.bf16.mxu0 0
    %1637 = vmatpush1.bf16.msra.mxu0 0
    %1638 = vmatprep.subr.bf16.mxu0 0
    %1639 = vmatpush1.bf16.msra.mxu0 0
    %1640 = vmatprep.subr.bf16.mxu0 0
    %1641 = vmatpush1.bf16.msra.mxu0 0
    %1642 = vmatprep.subr.bf16.mxu0 0
    %1643 = vmatpush1.bf16.msra.mxu0 0
    %1644 = vmatprep.mubr.bf16.mxu0 0
    %1645 = vmatmul.mubr.bf16.gmra.mrb[0].mxu0 %v761
    %v1646 = vpop.f32.mrb[0].mxu0
    %v1647 = vadd.f32 0.0, %v1646
    %v1648 = vpop.f32.mrb[0].mxu0
    %v1649 = vadd.f32 0.0, %v1648
    %v1650 = vpop.f32.mrb[0].mxu0
    %v1651 = vpop.f32.mrb[0].mxu0
    %1652 = vdwg.mxu0
    %1653 = vmatprep.subr.bf16.mxu0 %v1281
    %1654 = vmatpush1.bf16.msra.mxu0 %v1280
    %1655 = vmatprep.subr.bf16.mxu0 %v1297
    %1656 = vmatpush1.bf16.msra.mxu0 %v1296
    %1657 = vmatprep.subr.bf16.mxu0 %v1313
    %1658 = vmatpush1.bf16.msra.mxu0 %v1312
    %1659 = vmatprep.subr.bf16.mxu0 %v1329
    %1660 = vmatpush1.bf16.msra.mxu0 %v1328
    %1661 = vmatprep.subr.bf16.mxu0 %v1345
    %1662 = vmatpush1.bf16.msra.mxu0 %v1344
    %1663 = vmatprep.subr.bf16.mxu0 %v1361
    %1664 = vmatpush1.bf16.msra.mxu0 %v1360
    %1665 = vmatprep.subr.bf16.mxu0 %v1377
    %1666 = vmatpush1.bf16.msra.mxu0 %v1376
    %1667 = vmatprep.subr.bf16.mxu0 %v1393
    %1668 = vmatpush1.bf16.msra.mxu0 %v1392
    %1669 = vmatprep.subr.bf16.mxu0 0
    %1670 = vmatpush1.bf16.msra.mxu0 0
    %1671 = vmatprep.subr.bf16.mxu0 0
    %1672 = vmatpush1.bf16.msra.mxu0 0
    %1673 = vmatprep.subr.bf16.mxu0 0
    %1674 = vmatpush1.bf16.msra.mxu0 0
    %1675 = vmatprep.subr.bf16.mxu0 0
    %1676 = vmatpush1.bf16.msra.mxu0 0
    %1677 = vmatprep.subr.bf16.mxu0 0
    %1678 = vmatpush1.bf16.msra.mxu0 0
    %1679 = vmatprep.subr.bf16.mxu0 0
    %1680 = vmatpush1.bf16.msra.mxu0 0
    %1681 = vmatprep.subr.bf16.mxu0 0
    %1682 = vmatpush1.bf16.msra.mxu0 0
    %1683 = vmatprep.subr.bf16.mxu0 0
    %1684 = vmatpush1.bf16.msra.mxu0 0
    %1685 = vmatprep.mubr.bf16.mxu0 0
    %1686 = vmatmul.mubr.bf16.gmra.mrb[0].mxu0 %v761
    %v1687 = vpop.f32.mrb[0].mxu0
    %v1688 = vadd.f32 0.0, %v1687
    %v1689 = vpop.f32.mrb[0].mxu0
    %v1690 = vadd.f32 0.0, %v1689
    %v1691 = vpop.f32.mrb[0].mxu0
    %v1692 = vpop.f32.mrb[0].mxu0
    %1693 = vdwg.mxu0
    %1694 = vmatprep.subr.bf16.mxu0 %v1283
    %1695 = vmatpush1.bf16.msra.mxu0 %v1282
    %1696 = vmatprep.subr.bf16.mxu0 %v1299
    %1697 = vmatpush1.bf16.msra.mxu0 %v1298
    %1698 = vmatprep.subr.bf16.mxu0 %v1315
    %1699 = vmatpush1.bf16.msra.mxu0 %v1314
    %1700 = vmatprep.subr.bf16.mxu0 %v1331
    %1701 = vmatpush1.bf16.msra.mxu0 %v1330
    %1702 = vmatprep.subr.bf16.mxu0 %v1347
    %1703 = vmatpush1.bf16.msra.mxu0 %v1346
    %1704 = vmatprep.subr.bf16.mxu0 %v1363
    %1705 = vmatpush1.bf16.msra.mxu0 %v1362
    %1706 = vmatprep.subr.bf16.mxu0 %v1379
    %1707 = vmatpush1.bf16.msra.mxu0 %v1378
    %1708 = vmatprep.subr.bf16.mxu0 %v1395
    %1709 = vmatpush1.bf16.msra.mxu0 %v1394
    %1710 = vmatprep.subr.bf16.mxu0 0
    %1711 = vmatpush1.bf16.msra.mxu0 0
    %1712 = vmatprep.subr.bf16.mxu0 0
    %1713 = vmatpush1.bf16.msra.mxu0 0
    %1714 = vmatprep.subr.bf16.mxu0 0
    %1715 = vmatpush1.bf16.msra.mxu0 0
    %1716 = vmatprep.subr.bf16.mxu0 0
    %1717 = vmatpush1.bf16.msra.mxu0 0
    %1718 = vmatprep.subr.bf16.mxu0 0
    %1719 = vmatpush1.bf16.msra.mxu0 0
    %1720 = vmatprep.subr.bf16.mxu0 0
    %1721 = vmatpush1.bf16.msra.mxu0 0
    %1722 = vmatprep.subr.bf16.mxu0 0
    %1723 = vmatpush1.bf16.msra.mxu0 0
    %1724 = vmatprep.subr.bf16.mxu0 0
    %1725 = vmatpush1.bf16.msra.mxu0 0
    %1726 = vmatprep.mubr.bf16.mxu0 0
    %1727 = vmatmul.mubr.bf16.gmra.mrb[0].mxu0 %v761
    %v1728 = vpop.f32.mrb[0].mxu0
    %v1729 = vadd.f32 0.0, %v1728
    %v1730 = vpop.f32.mrb[0].mxu0
    %v1731 = vadd.f32 0.0, %v1730
    %v1732 = vpop.f32.mrb[0].mxu0
    %v1733 = vpop.f32.mrb[0].mxu0
    %1734 = vdwg.mxu0
    %1735 = vmatprep.subr.bf16.mxu0 %v1285
    %1736 = vmatpush1.bf16.msra.mxu0 %v1284
    %1737 = vmatprep.subr.bf16.mxu0 %v1301
    %1738 = vmatpush1.bf16.msra.mxu0 %v1300
    %1739 = vmatprep.subr.bf16.mxu0 %v1317
    %1740 = vmatpush1.bf16.msra.mxu0 %v1316
    %1741 = vmatprep.subr.bf16.mxu0 %v1333
    %1742 = vmatpush1.bf16.msra.mxu0 %v1332
    %1743 = vmatprep.subr.bf16.mxu0 %v1349
    %1744 = vmatpush1.bf16.msra.mxu0 %v1348
    %1745 = vmatprep.subr.bf16.mxu0 %v1365
    %1746 = vmatpush1.bf16.msra.mxu0 %v1364
    %1747 = vmatprep.subr.bf16.mxu0 %v1381
    %1748 = vmatpush1.bf16.msra.mxu0 %v1380
    %1749 = vmatprep.subr.bf16.mxu0 %v1397
    %1750 = vmatpush1.bf16.msra.mxu0 %v1396
    %1751 = vmatprep.subr.bf16.mxu0 0
    %1752 = vmatpush1.bf16.msra.mxu0 0
    %1753 = vmatprep.subr.bf16.mxu0 0
    %1754 = vmatpush1.bf16.msra.mxu0 0
    %1755 = vmatprep.subr.bf16.mxu0 0
    %1756 = vmatpush1.bf16.msra.mxu0 0
    %1757 = vmatprep.subr.bf16.mxu0 0
    %1758 = vmatpush1.bf16.msra.mxu0 0
    %1759 = vmatprep.subr.bf16.mxu0 0
    %1760 = vmatpush1.bf16.msra.mxu0 0
    %1761 = vmatprep.subr.bf16.mxu0 0
    %1762 = vmatpush1.bf16.msra.mxu0 0
    %1763 = vmatprep.subr.bf16.mxu0 0
    %1764 = vmatpush1.bf16.msra.mxu0 0
    %1765 = vmatprep.subr.bf16.mxu0 0
    %1766 = vmatpush1.bf16.msra.mxu0 0
    %1767 = vmatprep.mubr.bf16.mxu0 0
    %1768 = vmatmul.mubr.bf16.gmra.mrb[0].mxu0 %v761
    %v1769 = vpop.f32.mrb[0].mxu0
    %v1770 = vadd.f32 0.0, %v1769
    %v1771 = vpop.f32.mrb[0].mxu0
    %v1772 = vadd.f32 0.0, %v1771
    %v1773 = vpop.f32.mrb[0].mxu0
    %v1774 = vpop.f32.mrb[0].mxu0
    %1775 = vdwg.mxu0
    %1776 = vmatprep.subr.bf16.mxu0 %v1287
    %1777 = vmatpush1.bf16.msra.mxu0 %v1286
    %1778 = vmatprep.subr.bf16.mxu0 %v1303
    %1779 = vmatpush1.bf16.msra.mxu0 %v1302
    %1780 = vmatprep.subr.bf16.mxu0 %v1319
    %1781 = vmatpush1.bf16.msra.mxu0 %v1318
    %1782 = vmatprep.subr.bf16.mxu0 %v1335
    %1783 = vmatpush1.bf16.msra.mxu0 %v1334
    %1784 = vmatprep.subr.bf16.mxu0 %v1351
    %1785 = vmatpush1.bf16.msra.mxu0 %v1350
    %1786 = vmatprep.subr.bf16.mxu0 %v1367
    %1787 = vmatpush1.bf16.msra.mxu0 %v1366
    %1788 = vmatprep.subr.bf16.mxu0 %v1383
    %1789 = vmatpush1.bf16.msra.mxu0 %v1382
    %1790 = vmatprep.subr.bf16.mxu0 %v1399
    %1791 = vmatpush1.bf16.msra.mxu0 %v1398
    %1792 = vmatprep.subr.bf16.mxu0 0
    %1793 = vmatpush1.bf16.msra.mxu0 0
    %1794 = vmatprep.subr.bf16.mxu0 0
    %1795 = vmatpush1.bf16.msra.mxu0 0
    %1796 = vmatprep.subr.bf16.mxu0 0
    %1797 = vmatpush1.bf16.msra.mxu0 0
    %1798 = vmatprep.subr.bf16.mxu0 0
    %1799 = vmatpush1.bf16.msra.mxu0 0
    %1800 = vmatprep.subr.bf16.mxu0 0
    %1801 = vmatpush1.bf16.msra.mxu0 0
    %1802 = vmatprep.subr.bf16.mxu0 0
    %1803 = vmatpush1.bf16.msra.mxu0 0
    %1804 = vmatprep.subr.bf16.mxu0 0
    %1805 = vmatpush1.bf16.msra.mxu0 0
    %1806 = vmatprep.subr.bf16.mxu0 0
    %1807 = vmatpush1.bf16.msra.mxu0 0
    %1808 = vmatprep.mubr.bf16.mxu0 0
    %1809 = vmatmul.mubr.bf16.gmra.mrb[0].mxu0 %v761
    %v1810 = vpop.f32.mrb[0].mxu0
    %v1811 = vadd.f32 0.0, %v1810
    %v1812 = vpop.f32.mrb[0].mxu0
    %v1813 = vadd.f32 0.0, %v1812
    %v1814 = vpop.f32.mrb[0].mxu0
    %v1815 = vpop.f32.mrb[0].mxu0
    %1816 = vdwg.mxu0
    %1817 = vmatprep.subr.bf16.mxu0 %v1289
    %1818 = vmatpush1.bf16.msra.mxu0 %v1288
    %1819 = vmatprep.subr.bf16.mxu0 %v1305
    %1820 = vmatpush1.bf16.msra.mxu0 %v1304
    %1821 = vmatprep.subr.bf16.mxu0 %v1321
    %1822 = vmatpush1.bf16.msra.mxu0 %v1320
    %1823 = vmatprep.subr.bf16.mxu0 %v1337
    %1824 = vmatpush1.bf16.msra.mxu0 %v1336
    %1825 = vmatprep.subr.bf16.mxu0 %v1353
    %1826 = vmatpush1.bf16.msra.mxu0 %v1352
    %1827 = vmatprep.subr.bf16.mxu0 %v1369
    %1828 = vmatpush1.bf16.msra.mxu0 %v1368
    %1829 = vmatprep.subr.bf16.mxu0 %v1385
    %1830 = vmatpush1.bf16.msra.mxu0 %v1384
    %1831 = vmatprep.subr.bf16.mxu0 %v1401
    %1832 = vmatpush1.bf16.msra.mxu0 %v1400
    %1833 = vmatprep.subr.bf16.mxu0 0
    %1834 = vmatpush1.bf16.msra.mxu0 0
    %1835 = vmatprep.subr.bf16.mxu0 0
    %1836 = vmatpush1.bf16.msra.mxu0 0
    %1837 = vmatprep.subr.bf16.mxu0 0
    %1838 = vmatpush1.bf16.msra.mxu0 0
    %1839 = vmatprep.subr.bf16.mxu0 0
    %1840 = vmatpush1.bf16.msra.mxu0 0
    %1841 = vmatprep.subr.bf16.mxu0 0
    %1842 = vmatpush1.bf16.msra.mxu0 0
    %1843 = vmatprep.subr.bf16.mxu0 0
    %1844 = vmatpush1.bf16.msra.mxu0 0
    %1845 = vmatprep.subr.bf16.mxu0 0
    %1846 = vmatpush1.bf16.msra.mxu0 0
    %1847 = vmatprep.subr.bf16.mxu0 0
    %1848 = vmatpush1.bf16.msra.mxu0 0
    %1849 = vmatprep.mubr.bf16.mxu0 0
    %1850 = vmatmul.mubr.bf16.gmra.mrb[0].mxu0 %v761
    %v1851 = vpop.f32.mrb[0].mxu0
    %v1852 = vadd.f32 0.0, %v1851
    %v1853 = vpop.f32.mrb[0].mxu0
    %v1854 = vadd.f32 0.0, %v1853
    %v1855 = vpop.f32.mrb[0].mxu0
    %v1856 = vpop.f32.mrb[0].mxu0
    %1857 = vdwg.mxu0
    %v1858 = vld [vmem:[#allocation8] sm:$0xff]
    %v1860 = vlaneseq
    %v1861 = vshrl.u32 %v1860, 7
    %v1862 = vsub.s32 0, %v1861
    %v1863 = vrot.slane %v1858, %v1862
    %v1864 = vlaneseq
    %v1865 = vshrl.u32 %v1864, 7
    %v1866 = vsub.s32 1, %v1865
    %v1867 = vrot.slane %v1858, %v1866
    %v1868 = vlaneseq
    %v1869 = vshrl.u32 %v1868, 7
    %v1870 = vsub.s32 2, %v1869
    %v1871 = vrot.slane %v1858, %v1870
    %v1872 = vlaneseq
    %v1873 = vshrl.u32 %v1872, 7
    %v1874 = vsub.s32 3, %v1873
    %v1875 = vrot.slane %v1858, %v1874
    %v1876 = vlaneseq
    %v1877 = vshrl.u32 %v1876, 7
    %v1878 = vsub.s32 4, %v1877
    %v1879 = vrot.slane %v1858, %v1878
    %v1880 = vlaneseq
    %v1881 = vshrl.u32 %v1880, 7
    %v1882 = vsub.s32 5, %v1881
    %v1883 = vrot.slane %v1858, %v1882
    %v1884 = vlaneseq
    %v1885 = vshrl.u32 %v1884, 7
    %v1886 = vsub.s32 6, %v1885
    %v1887 = vrot.slane %v1858, %v1886
    %v1888 = vlaneseq
    %v1889 = vshrl.u32 %v1888, 7
    %v1890 = vsub.s32 7, %v1889
    %v1891 = vrot.slane %v1858, %v1890
    %v1900 = vadd.f32 %v1729, %v1863
    %v1901 = vadd.f32 %v1731, %v1867
    %v1902 = vadd.f32 %v1770, %v1871
    %v1903 = vadd.f32 %v1772, %v1875
    %v1904 = vadd.f32 %v1811, %v1879
    %v1905 = vadd.f32 %v1813, %v1883
    %v1906 = vadd.f32 %v1852, %v1887
    %v1907 = vadd.f32 %v1854, %v1891
    %v1908 = vxor.u32 %v1900, 2147483648
    %v1909 = vxor.u32 %v1901, 2147483648
    %v1910 = vxor.u32 %v1902, 2147483648
    %v1911 = vxor.u32 %v1903, 2147483648
    %v1912 = vxor.u32 %v1904, 2147483648
    %v1913 = vxor.u32 %v1905, 2147483648
    %v1914 = vxor.u32 %v1906, 2147483648
    %v1915 = vxor.u32 %v1907, 2147483648
    %v1916 = vmul.f32 %v1908, 1.442695
    %v1917 = vpow.pop %v1916
    %v1918 = vmul.f32 %v1909, 1.442695
    %v1919 = vpow.pop %v1918
    %v1920 = vmul.f32 %v1910, 1.442695
    %v1921 = vpow.pop %v1920
    %v1922 = vmul.f32 %v1911, 1.442695
    %v1923 = vpow.pop %v1922
    %v1924 = vmul.f32 %v1912, 1.442695
    %v1925 = vpow.pop %v1924
    %v1926 = vmul.f32 %v1913, 1.442695
    %v1927 = vpow.pop %v1926
    %v1928 = vmul.f32 %v1914, 1.442695
    %v1929 = vpow.pop %v1928
    %v1930 = vmul.f32 %v1915, 1.442695
    %v1931 = vpow.pop %v1930
    %v1932 = vadd.f32 %v1917, 1.0
    %v1933 = vadd.f32 %v1919, 1.0
    %v1934 = vadd.f32 %v1921, 1.0
    %v1935 = vadd.f32 %v1923, 1.0
    %v1936 = vadd.f32 %v1925, 1.0
    %v1937 = vadd.f32 %v1927, 1.0
    %v1938 = vadd.f32 %v1929, 1.0
    %v1939 = vadd.f32 %v1931, 1.0
    %v1940 = vrcp.pop %v1932
    %v1941 = vmul.f32 1.0, %v1940
    %v1942 = vrcp.pop %v1933
    %v1943 = vmul.f32 1.0, %v1942
    %v1944 = vrcp.pop %v1934
    %v1945 = vmul.f32 1.0, %v1944
    %v1946 = vrcp.pop %v1935
    %v1947 = vmul.f32 1.0, %v1946
    %v1948 = vrcp.pop %v1936
    %v1949 = vmul.f32 1.0, %v1948
    %v1950 = vrcp.pop %v1937
    %v1951 = vmul.f32 1.0, %v1950
    %v1952 = vrcp.pop %v1938
    %v1953 = vmul.f32 1.0, %v1952
    %v1954 = vrcp.pop %v1939
    %v1955 = vmul.f32 1.0, %v1954
    %v1956 = vadd.f32 %v1941, %v1565
    %v1957 = vadd.f32 %v1943, %v1567
    %v1958 = vadd.f32 %v1945, %v1606
    %v1959 = vadd.f32 %v1947, %v1608
    %v1960 = vadd.f32 %v1949, %v1647
    %v1961 = vadd.f32 %v1951, %v1649
    %v1962 = vadd.f32 %v1953, %v1688
    %v1963 = vadd.f32 %v1955, %v1690
    %v1964 = vld [vmem:[%s3] sm:$0xff]
    %v1966 = vlaneseq
    %v1967 = vshrl.u32 %v1966, 7
    %v1968 = vsub.s32 0, %v1967
    %v1969 = vrot.slane %v1964, %v1968
    %v1970 = vlaneseq
    %v1971 = vshrl.u32 %v1970, 7
    %v1972 = vsub.s32 1, %v1971
    %v1973 = vrot.slane %v1964, %v1972
    %v1974 = vlaneseq
    %v1975 = vshrl.u32 %v1974, 7
    %v1976 = vsub.s32 2, %v1975
    %v1977 = vrot.slane %v1964, %v1976
    %v1978 = vlaneseq
    %v1979 = vshrl.u32 %v1978, 7
    %v1980 = vsub.s32 3, %v1979
    %v1981 = vrot.slane %v1964, %v1980
    %v1982 = vlaneseq
    %v1983 = vshrl.u32 %v1982, 7
    %v1984 = vsub.s32 4, %v1983
    %v1985 = vrot.slane %v1964, %v1984
    %v1986 = vlaneseq
    %v1987 = vshrl.u32 %v1986, 7
    %v1988 = vsub.s32 5, %v1987
    %v1989 = vrot.slane %v1964, %v1988
    %v1990 = vlaneseq
    %v1991 = vshrl.u32 %v1990, 7
    %v1992 = vsub.s32 6, %v1991
    %v1993 = vrot.slane %v1964, %v1992
    %v1994 = vlaneseq
    %v1995 = vshrl.u32 %v1994, 7
    %v1996 = vsub.s32 7, %v1995
    %v1997 = vrot.slane %v1964, %v1996
    %v2006 = vadd.f32 %v1956, %v1969
    %v2007 = vadd.f32 %v1957, %v1973
    %v2008 = vadd.f32 %v1958, %v1977
    %v2009 = vadd.f32 %v1959, %v1981
    %v2010 = vadd.f32 %v1960, %v1985
    %v2011 = vadd.f32 %v1961, %v1989
    %v2012 = vadd.f32 %v1962, %v1993
    %v2013 = vadd.f32 %v1963, %v1997
    %v2014 = vmul.f32 %v73, %v2006
    %v2015 = vmul.f32 %v74, %v2007
    %v2016 = vmul.f32 %v75, %v2008
    %v2017 = vmul.f32 %v76, %v2009
    %v2018 = vmul.f32 %v77, %v2010
    %v2019 = vmul.f32 %v78, %v2011
    %v2020 = vmul.f32 %v79, %v2012
    %v2021 = vmul.f32 %v80, %v2013
    %2022 = vst [vmem:[#allocation10] sm:$0xff] %v2014
    %2023 = vst [vmem:[#allocation10 + $0x8] sm:$0xff] %v2015
    %2024 = vst [vmem:[#allocation10 + $0x10] sm:$0xff] %v2016
    %2025 = vst [vmem:[#allocation10 + $0x18] sm:$0xff] %v2017
    %2026 = vst [vmem:[#allocation10 + $0x20] sm:$0xff] %v2018
    %2027 = vst [vmem:[#allocation10 + $0x28] sm:$0xff] %v2019
    %2028 = vst [vmem:[#allocation10 + $0x30] sm:$0xff] %v2020
    %2029 = vst [vmem:[#allocation10 + $0x38] sm:$0xff] %v2021
    // Predicated region
    $region38: #{tpu_custom_call.1} parent=1 // pred_check
      _
    $region39: #{tpu_custom_call.1} parent=1 // pred_check_branch
      %2031 = sbr.rel (0) target = $region41
    $region40: #{tpu_custom_call.1} parent=1 // pred_region
      %s2033 = ssub.s32 1024, 1024
      %2034 = vsyncadd [#allocation4], %s2033
      %s2036 = sshll.u32 [#allocation10], 4
      %s2037 = int_to_ptr.vmem [resolvable:$true] %s2036
      %2039 = dma.vmem_to_hbm [thread:$0]  %s2037, 1024, %s5, [#allocation4]
    $region41: #{tpu_custom_call.1} parent=1 // pred_fallthru
      _
    // Predicated region
    $region42: #{tpu_custom_call.1} parent=1 // pred_check
      _
    $region43: #{tpu_custom_call.1} parent=1 // pred_check_branch
      %2041 = sbr.rel (0) target = $region45
    $region44: #{tpu_custom_call.1} parent=1 // pred_region
      %2042 = dma.done [#allocation4], 1024
    $region45: #{tpu_custom_call.1} parent=1 // pred_fallthru
      _
    %2043 = vsyncpa [#allocation3], 1
    %2044 = vsyncpa [#allocation6], 1
    %2045 = vsyncpa [#allocation9], 1
    %2046 = vsyncpa [#allocation4], 1

</llo_original>
